<compile_context>
chip_gen: v7x
topology: tpu7x:2x2x1
jax: 0.10.0
libtpu: 0.0.40
codegen_flags: <defaults>
</compile_context>

<pallas_src>
import functools

import jax
import jax.numpy as jnp
from jax.experimental import pallas as pl
from jax.experimental.pallas import tpu as pltpu

EPS = 1e-5


def _layer_norm(x, w, b):
    # f32 elementwise math; rsqrt goes to the EUP.
    mu = jnp.mean(x, axis=-1, keepdims=True)
    var = jnp.mean((x - mu) ** 2, axis=-1, keepdims=True)
    return (x - mu) * jax.lax.rsqrt(var + EPS) * w + b


# ---------------------------------------------------------------------------
# Fused kernel: all residual attention blocks + final head, layer-pipelined.
# ---------------------------------------------------------------------------
def _fused_encoder_kernel(num_heads, batch, seqlen,
                          x_in, ln1_w, ln1_b, wqkv_t, bqkv, wo_t, bo,
                          ln2_w, ln2_b, w1_t, b1, w2_t, b2,
                          lnf_w, lnf_b, wfc_t, bfc, causal_bias,
                          out_ref, x_sc):
    layer = pl.program_id(0)

    # Load the embedded tokens into the resident VMEM residual stream once.
    @pl.when(layer == 0)
    def _():
        x_sc[...] = x_in[...]

    BL, H = x_sc.shape
    B, L = batch, seqlen
    nh = num_heads
    hd = H // nh
    scale = 1.0 / float(hd) ** 0.5
    mm_dtype = wqkv_t.dtype          # bf16 (or f32) for MXU operands only

    x = x_sc[...]                    # (B*L, H) f32 residual stream

    # --- attention sub-block: x = x + attn(ln_1(x)) ---------------------------
    h1 = _layer_norm(x, ln1_w[0], ln1_b[0])
    qkv = jnp.dot(h1.astype(mm_dtype), wqkv_t[0],
                  preferred_element_type=jnp.float32) + bqkv[0]   # (B*L, 3H) f32
    q = (qkv[:, :H] * scale).reshape(B, L, H)
    k = qkv[:, H:2 * H].reshape(B, L, H)
    v = qkv[:, 2 * H:].reshape(B, L, H)
    bias = causal_bias[...]          # (L, L) additive causal bias, resident

    # Project-and-accumulate per head (no lane-axis concatenate):
    #   concat_h(head_h) @ Wo^T == sum_h head_h @ Wo^T[h*hd:(h+1)*hd, :]
    attn = jnp.zeros((BL, H), jnp.float32)
    for hh in range(nh):             # static unroll; heads are few
        sl = slice(hh * hd, (hh + 1) * hd)
        qh = q[:, :, sl].astype(mm_dtype)
        kh = k[:, :, sl].astype(mm_dtype)
        vh = v[:, :, sl].astype(mm_dtype)
        s = jnp.einsum('bld,bkd->blk', qh, kh,
                       preferred_element_type=jnp.float32) + bias  # f32 scores
        s = s - jnp.max(s, axis=-1, keepdims=True)
        p = jnp.exp(s)
        p = p * pl.reciprocal(jnp.sum(p, axis=-1, keepdims=True), approx=True)
        ho = jnp.einsum('blk,bkd->bld', p.astype(mm_dtype), vh,
                        preferred_element_type=jnp.float32)        # (B, L, hd)
        attn = attn + jnp.dot(ho.reshape(BL, hd).astype(mm_dtype),
                              wo_t[0, hh],                          # (hd, H)
                              preferred_element_type=jnp.float32)
    x = x + attn + bo[0]

    # --- MLP sub-block: x = x + mlp(ln_2(x)), QuickGELU = u*sigmoid(1.702u) ---
    h2 = _layer_norm(x, ln2_w[0], ln2_b[0])
    u = jnp.dot(h2.astype(mm_dtype), w1_t[0],
                preferred_element_type=jnp.float32) + b1[0]
    u = u * jax.nn.sigmoid(1.702 * u)
    u = jnp.dot(u.astype(mm_dtype), w2_t[0],
                preferred_element_type=jnp.float32) + b2[0]
    x = x + u
    x_sc[...] = x

    # --- epilogue on the last layer: ln_final + mean over sequence + fc -------
    @pl.when(layer == pl.num_programs(0) - 1)
    def _():
        hf = _layer_norm(x, lnf_w[...], lnf_b[...])                 # (B*L, H)
        m = jnp.mean(hf.reshape(B, L, H), axis=1)                   # (B, H)
        out_ref[...] = jnp.dot(m.astype(mm_dtype), wfc_t[...],
                               preferred_element_type=jnp.float32) + bfc[...]


def _fused_forward(x2d, p, batch, seqlen, num_heads):
    BL, H = x2d.shape
    num_layers = p['wqkv_t'].shape[0]
    dim_emb = p['wfc_t'].shape[1]

    # Additive causal bias (CLIP text transformer mask), computed once.
    row = jnp.arange(seqlen, dtype=jnp.int32)[:, None]
    col = jnp.arange(seqlen, dtype=jnp.int32)[None, :]
    causal_bias = jnp.where(col <= row, 0.0, -1e30).astype(jnp.float32)

    stacked = [p['ln1_w'], p['ln1_b'], p['wqkv_t'], p['bqkv'], p['wo_t'], p['bo'],
               p['ln2_w'], p['ln2_b'], p['w1_t'], p['b1'], p['w2_t'], p['b2']]
    resident = [p['lnf_w'], p['lnf_b'], p['wfc_t'], p['bfc'], causal_bias]

    def layer_spec(a):      # per-layer block, indexed by the layer grid axis
        return pl.BlockSpec((1,) + a.shape[1:],
                            lambda l, _nd=a.ndim: (l,) + (0,) * (_nd - 1))

    def resident_spec(a):   # constant over the layer axis -> stays in VMEM
        return pl.BlockSpec(a.shape, lambda l, _nd=a.ndim: (0,) * _nd)

    # NOTE: at real CLIP sizes (H=512, 12 layers), set
    # pltpu.CompilerParams(vmem_limit_bytes=...) and keep weights bf16 so the
    # double-buffered layer pipeline fits v7x's 64 MiB VMEM.
    return pl.pallas_call(
        functools.partial(_fused_encoder_kernel, num_heads, batch, seqlen),
        out_shape=jax.ShapeDtypeStruct((batch, dim_emb), jnp.float32),
        grid=(num_layers,),
        in_specs=[pl.BlockSpec((BL, H), lambda l: (0, 0))]
                 + [layer_spec(a) for a in stacked]
                 + [resident_spec(a) for a in resident],
        out_specs=pl.BlockSpec((batch, dim_emb), lambda l: (0, 0)),
        scratch_shapes=[pltpu.VMEM((BL, H), jnp.float32)],
        compiler_params=pltpu.CompilerParams(
            dimension_semantics=("arbitrary",)),   # layers are sequential
    )(x2d, *stacked, *resident)


# ---------------------------------------------------------------------------
# Parameter construction (PyTorch layout) + packing (stack / transpose / cast)
# ---------------------------------------------------------------------------
def init_params(key, vocab_size, max_len, hidden, num_layers, dim_emb):
    ks = iter(jax.random.split(key, 8 + 12 * num_layers))
    nrm = lambda shape, std: (jax.random.normal(next(ks), shape, jnp.float32) * std)

    params = {
        'token_embedding': nrm((vocab_size, hidden), 0.02),
        'positional_embedding': nrm((max_len, hidden), 0.01),
        'ln_final_w': jnp.ones((1, hidden), jnp.float32),
        'ln_final_b': jnp.zeros((1, hidden), jnp.float32),
        'fc_w': nrm((dim_emb, hidden), 0.02),          # (out, in) like nn.Linear
        'fc_b': jnp.zeros((1, dim_emb), jnp.float32),
        'blocks': [],
    }
    for _ in range(num_layers):
        params['blocks'].append({
            'ln1_w': jnp.ones((1, hidden), jnp.float32),
            'ln1_b': jnp.zeros((1, hidden), jnp.float32),
            'wqkv': nrm((3 * hidden, hidden), 0.02),
            'bqkv': jnp.zeros((1, 3 * hidden), jnp.float32),
            'wo': nrm((hidden, hidden), 0.02),
            'bo': jnp.zeros((1, hidden), jnp.float32),
            'ln2_w': jnp.ones((1, hidden), jnp.float32),
            'ln2_b': jnp.zeros((1, hidden), jnp.float32),
            'w1': nrm((4 * hidden, hidden), 0.02),
            'b1': jnp.zeros((1, 4 * hidden), jnp.float32),
            'w2': nrm((hidden, 4 * hidden), 0.02),
            'b2': jnp.zeros((1, hidden), jnp.float32),
        })
    return params


def pack_params(params, num_heads, matmul_dtype=jnp.bfloat16):
    """Stack per-layer params on a leading layer axis, pre-transpose weights
    once (no in-kernel .T), pre-split Wo^T per head, cast matmul weights."""
    blocks = params['blocks']
    hidden = params['token_embedding'].shape[1]
    hd = hidden // num_heads
    stack = lambda key: jnp.stack([b[key] for b in blocks], axis=0)

    return {
        'token_embedding': params['token_embedding'],
        'positional_embedding': params['positional_embedding'],
        'ln1_w': stack('ln1_w'), 'ln1_b': stack('ln1_b'),           # (N,1,H) f32
        'wqkv_t': jnp.stack([b['wqkv'].T for b in blocks]).astype(matmul_dtype),   # (N,H,3H)
        'bqkv': stack('bqkv'),                                       # (N,1,3H) f32
        'wo_t': jnp.stack([b['wo'].T.reshape(num_heads, hd, hidden)
                           for b in blocks]).astype(matmul_dtype),   # (N,nh,hd,H)
        'bo': stack('bo'),
        'ln2_w': stack('ln2_w'), 'ln2_b': stack('ln2_b'),
        'w1_t': jnp.stack([b['w1'].T for b in blocks]).astype(matmul_dtype),       # (N,H,4H)
        'b1': stack('b1'),
        'w2_t': jnp.stack([b['w2'].T for b in blocks]).astype(matmul_dtype),       # (N,4H,H)
        'b2': stack('b2'),
        'lnf_w': params['ln_final_w'], 'lnf_b': params['ln_final_b'],
        'wfc_t': params['fc_w'].T.astype(matmul_dtype),              # (H, dim_emb)
        'bfc': params['fc_b'],
    }


def clip_recipe_embedding(input_ids, packed, num_heads, truncation_limit):
    # input_ids: (B, L) int32; truncate as in the PyTorch forward.
    input_ids = input_ids[:, :truncation_limit]
    B, L = input_ids.shape
    H = packed['token_embedding'].shape[1]

    # TODO(synk): embedding gather + positional add left in plain JAX (no dense
    # hot-path benefit from moving the gather into the kernel).
    x = packed['token_embedding'][input_ids]                       # (B, L, H) f32
    x = x + packed['positional_embedding'][:L].astype(x.dtype)

    # The PyTorch permute to (L, B, H) only exists to satisfy nn.MultiheadAttention;
    # the math is batch-independent, so the kernel works on a (B*L, H) slab.
    x2d = x.reshape(B * L, H)
    return _fused_forward(x2d, packed, B, L, num_heads)


if __name__ == "__main__":
    # Small synthetic configuration consistent with the module's forward.
    B, L = 2, 8              # batch, sequence (truncation_limit)
    H = 32                   # transformer width (hidden_size)
    NUM_HEADS = 4
    NUM_LAYERS = 2
    DIM_EMB = 16
    VOCAB = 50

    key = jax.random.PRNGKey(0)
    k_ids, k_params = jax.random.split(key)

    params = init_params(k_params, VOCAB, L, H, NUM_LAYERS, DIM_EMB)
    # bf16 matmul operands with f32 accumulation (MXU win, elementwise stays f32).
    packed = pack_params(params, NUM_HEADS, matmul_dtype=jnp.bfloat16)
    input_ids = jax.random.randint(k_ids, (B, L), minval=0, maxval=VOCAB,
                                   dtype=jnp.int32)

    out = clip_recipe_embedding(input_ids, packed, NUM_HEADS, truncation_limit=L)
    out = jax.block_until_ready(out)
    assert out.shape == (B, DIM_EMB) and out.dtype == jnp.float32
    assert bool(jnp.all(jnp.isfinite(out)))
    print("KERNEL_OK")
</pallas_src>

<mosaic_0001>
module attributes {stable_mosaic.version = 11 : i64} {
  func.func @_fused_encoder_kernel(%arg0: i32, %arg1: memref<16x32xf32, #tpu.memory_space<vmem>>, %arg2: memref<1x1x32xf32, #tpu.memory_space<vmem>>, %arg3: memref<1x1x32xf32, #tpu.memory_space<vmem>>, %arg4: memref<1x32x96xbf16, #tpu.memory_space<vmem>>, %arg5: memref<1x1x96xf32, #tpu.memory_space<vmem>>, %arg6: memref<1x4x8x32xbf16, #tpu.memory_space<vmem>>, %arg7: memref<1x1x32xf32, #tpu.memory_space<vmem>>, %arg8: memref<1x1x32xf32, #tpu.memory_space<vmem>>, %arg9: memref<1x1x32xf32, #tpu.memory_space<vmem>>, %arg10: memref<1x32x128xbf16, #tpu.memory_space<vmem>>, %arg11: memref<1x1x128xf32, #tpu.memory_space<vmem>>, %arg12: memref<1x128x32xbf16, #tpu.memory_space<vmem>>, %arg13: memref<1x1x32xf32, #tpu.memory_space<vmem>>, %arg14: memref<1x32xf32, #tpu.memory_space<vmem>>, %arg15: memref<1x32xf32, #tpu.memory_space<vmem>>, %arg16: memref<32x16xbf16, #tpu.memory_space<vmem>>, %arg17: memref<1x16xf32, #tpu.memory_space<vmem>>, %arg18: memref<8x8xf32, #tpu.memory_space<vmem>>, %arg19: memref<2x16xf32, #tpu.memory_space<vmem>>, %arg20: memref<16x32xf32, #tpu.memory_space<vmem>>) attributes {dimension_semantics = [#tpu.dimension_semantics<arbitrary>], iteration_bounds = array<i64: 2>, scalar_prefetch = 0 : i64, scratch_operands = 1 : i64, tpu.core_type = #tpu.core_type<tc>, window_params = [{pipeline_mode = #tpu.pipeline_mode<synchronous>, transform_indices = @transform_0, window_bounds = array<i64: 16, 32>}, {transform_indices = @transform_1, window_bounds = array<i64: 1, 1, 32>}, {transform_indices = @transform_2, window_bounds = array<i64: 1, 1, 32>}, {transform_indices = @transform_3, window_bounds = array<i64: 1, 32, 96>}, {transform_indices = @transform_4, window_bounds = array<i64: 1, 1, 96>}, {transform_indices = @transform_5, window_bounds = array<i64: 1, 4, 8, 32>}, {transform_indices = @transform_6, window_bounds = array<i64: 1, 1, 32>}, {transform_indices = @transform_7, window_bounds = array<i64: 1, 1, 32>}, {transform_indices = @transform_8, window_bounds = array<i64: 1, 1, 32>}, {transform_indices = @transform_9, window_bounds = array<i64: 1, 32, 128>}, {transform_indices = @transform_10, window_bounds = array<i64: 1, 1, 128>}, {transform_indices = @transform_11, window_bounds = array<i64: 1, 128, 32>}, {transform_indices = @transform_12, window_bounds = array<i64: 1, 1, 32>}, {pipeline_mode = #tpu.pipeline_mode<synchronous>, transform_indices = @transform_13, window_bounds = array<i64: 1, 32>}, {pipeline_mode = #tpu.pipeline_mode<synchronous>, transform_indices = @transform_14, window_bounds = array<i64: 1, 32>}, {pipeline_mode = #tpu.pipeline_mode<synchronous>, transform_indices = @transform_15, window_bounds = array<i64: 32, 16>}, {pipeline_mode = #tpu.pipeline_mode<synchronous>, transform_indices = @transform_16, window_bounds = array<i64: 1, 16>}, {pipeline_mode = #tpu.pipeline_mode<synchronous>, transform_indices = @transform_17, window_bounds = array<i64: 8, 8>}, {pipeline_mode = #tpu.pipeline_mode<synchronous>, transform_indices = @transform_18, window_bounds = array<i64: 2, 16>}]} {
    %c0_i32 = arith.constant 0 : i32
    %0 = arith.cmpi eq, %arg0, %c0_i32 : i32
    %1 = arith.extui %0 : i1 to i32
    %c0_i32_0 = arith.constant 0 : i32
    %2 = arith.cmpi ne, %1, %c0_i32_0 : i32
    scf.if %2 {
      %c0_89 = arith.constant 0 : index
      %c0_90 = arith.constant 0 : index
      %220 = vector.load %arg1[%c0_89, %c0_90] : memref<16x32xf32, #tpu.memory_space<vmem>>, vector<16x32xf32>
      %c0_91 = arith.constant 0 : index
      %c0_92 = arith.constant 0 : index
      %221 = vector.load %arg20[%c0_91, %c0_92] : memref<16x32xf32, #tpu.memory_space<vmem>>, vector<16x32xf32>
      tpu.vector_store %arg20[%c0_91, %c0_92], %220 {strides = array<i32>} : memref<16x32xf32, #tpu.memory_space<vmem>>, vector<16x32xf32>,
    } else {
    }
    %c0 = arith.constant 0 : index
    %c0_1 = arith.constant 0 : index
    %3 = vector.load %arg20[%c0, %c0_1] : memref<16x32xf32, #tpu.memory_space<vmem>>, vector<16x32xf32>
    %c0_2 = arith.constant 0 : index
    %c0_3 = arith.constant 0 : index
    %c0_4 = arith.constant 0 : index
    %4 = vector.load %arg2[%c0_2, %c0_3, %c0_4] : memref<1x1x32xf32, #tpu.memory_space<vmem>>, vector<1x1x32xf32>
    %5 = vector.shape_cast %4 : vector<1x1x32xf32> to vector<1x32xf32>
    %c0_5 = arith.constant 0 : index
    %c0_6 = arith.constant 0 : index
    %c0_7 = arith.constant 0 : index
    %6 = vector.load %arg3[%c0_5, %c0_6, %c0_7] : memref<1x1x32xf32, #tpu.memory_space<vmem>>, vector<1x1x32xf32>
    %7 = vector.shape_cast %6 : vector<1x1x32xf32> to vector<1x32xf32>
    %cst = arith.constant dense<0.000000e+00> : vector<16xf32>
    %8 = vector.multi_reduction <add>, %3, %cst [1] : vector<16x32xf32> to vector<16xf32>
    %9 = vector.shape_cast %8 : vector<16xf32> to vector<16x1xf32>
    %cst_8 = arith.constant 3.200000e+01 : f32
    %10 = vector.broadcast %cst_8 : f32 to vector<16x1xf32>
    %11 = arith.divf %9, %10 : vector<16x1xf32>
    %12 = vector.broadcast %11 : vector<16x1xf32> to vector<16x32xf32>
    %13 = arith.subf %3, %12 : vector<16x32xf32>
    %14 = arith.mulf %13, %13 : vector<16x32xf32>
    %cst_9 = arith.constant dense<0.000000e+00> : vector<16xf32>
    %15 = vector.multi_reduction <add>, %14, %cst_9 [1] : vector<16x32xf32> to vector<16xf32>
    %16 = vector.shape_cast %15 : vector<16xf32> to vector<16x1xf32>
    %cst_10 = arith.constant 3.200000e+01 : f32
    %17 = vector.broadcast %cst_10 : f32 to vector<16x1xf32>
    %18 = arith.divf %16, %17 : vector<16x1xf32>
    %19 = vector.broadcast %11 : vector<16x1xf32> to vector<16x32xf32>
    %20 = arith.subf %3, %19 : vector<16x32xf32>
    %cst_11 = arith.constant 9.99999974E-6 : f32
    %21 = vector.broadcast %cst_11 : f32 to vector<16x1xf32>
    %22 = arith.addf %18, %21 : vector<16x1xf32>
    %23 = math.rsqrt %22 : vector<16x1xf32>
    %24 = vector.broadcast %23 : vector<16x1xf32> to vector<16x32xf32>
    %25 = arith.mulf %20, %24 : vector<16x32xf32>
    %26 = vector.broadcast %5 : vector<1x32xf32> to vector<16x32xf32>
    %27 = arith.mulf %25, %26 : vector<16x32xf32>
    %28 = vector.broadcast %7 : vector<1x32xf32> to vector<16x32xf32>
    %29 = arith.addf %27, %28 : vector<16x32xf32>
    %30 = arith.truncf %29 : vector<16x32xf32> to vector<16x32xbf16>
    %c0_12 = arith.constant 0 : index
    %c0_13 = arith.constant 0 : index
    %c0_14 = arith.constant 0 : index
    %31 = vector.load %arg4[%c0_12, %c0_13, %c0_14] : memref<1x32x96xbf16, #tpu.memory_space<vmem>>, vector<1x32x96xbf16>
    %32 = vector.shape_cast %31 : vector<1x32x96xbf16> to vector<32x96xbf16>
    %cst_15 = arith.constant dense<0.000000e+00> : vector<16x96xf32>
    %33 = tpu.matmul %30, %32, %cst_15 {dimension_numbers = #tpu.dot_dimension_numbers<[1], [0], [0], [1], [0, 0, 1, 1], [], []>} : vector<16x32xbf16>, vector<32x96xbf16>, vector<16x96xf32> -> vector<16x96xf32>
    %c0_16 = arith.constant 0 : index
    %c0_17 = arith.constant 0 : index
    %c0_18 = arith.constant 0 : index
    %34 = vector.load %arg5[%c0_16, %c0_17, %c0_18] : memref<1x1x96xf32, #tpu.memory_space<vmem>>, vector<1x1x96xf32>
    %35 = vector.shape_cast %34 : vector<1x1x96xf32> to vector<1x96xf32>
    %36 = vector.broadcast %35 : vector<1x96xf32> to vector<16x96xf32>
    %37 = arith.addf %33, %36 : vector<16x96xf32>
    %38 = vector.extract_strided_slice %37 {offsets = [0, 0], sizes = [16, 32], strides = [1, 1]} : vector<16x96xf32> to vector<16x32xf32>
    %cst_19 = arith.constant 0.353553385 : f32
    %39 = vector.broadcast %cst_19 : f32 to vector<16x32xf32>
    %40 = arith.mulf %38, %39 : vector<16x32xf32>
    %41 = vector.shape_cast %40 : vector<16x32xf32> to vector<2x8x32xf32>
    %42 = vector.extract_strided_slice %37 {offsets = [0, 32], sizes = [16, 32], strides = [1, 1]} : vector<16x96xf32> to vector<16x32xf32>
    %43 = vector.shape_cast %42 : vector<16x32xf32> to vector<2x8x32xf32>
    %44 = vector.extract_strided_slice %37 {offsets = [0, 64], sizes = [16, 32], strides = [1, 1]} : vector<16x96xf32> to vector<16x32xf32>
    %45 = vector.shape_cast %44 : vector<16x32xf32> to vector<2x8x32xf32>
    %c0_20 = arith.constant 0 : index
    %c0_21 = arith.constant 0 : index
    %46 = vector.load %arg18[%c0_20, %c0_21] : memref<8x8xf32, #tpu.memory_space<vmem>>, vector<8x8xf32>
    %cst_22 = arith.constant 0.000000e+00 : f32
    %47 = vector.broadcast %cst_22 : f32 to vector<16x32xf32>
    %48 = vector.extract_strided_slice %41 {offsets = [0, 0, 0], sizes = [2, 8, 8], strides = [1, 1, 1]} : vector<2x8x32xf32> to vector<2x8x8xf32>
    %49 = arith.truncf %48 : vector<2x8x8xf32> to vector<2x8x8xbf16>
    %50 = vector.extract_strided_slice %43 {offsets = [0, 0, 0], sizes = [2, 8, 8], strides = [1, 1, 1]} : vector<2x8x32xf32> to vector<2x8x8xf32>
    %51 = arith.truncf %50 : vector<2x8x8xf32> to vector<2x8x8xbf16>
    %52 = vector.extract_strided_slice %45 {offsets = [0, 0, 0], sizes = [2, 8, 8], strides = [1, 1, 1]} : vector<2x8x32xf32> to vector<2x8x8xf32>
    %53 = arith.truncf %52 : vector<2x8x8xf32> to vector<2x8x8xbf16>
    "tpu.trace_start"() <{level = 10 : i32, message = "bld,bkd->blk"}> : () -> ()
    %cst_23 = arith.constant dense<0.000000e+00> : vector<2x8x8xf32>
    %54 = tpu.matmul %49, %51, %cst_23 {dimension_numbers = #tpu.dot_dimension_numbers<[2], [2], [1], [1], [0, 0, 0, 1, 1, 1], [0], [0]>} : vector<2x8x8xbf16>, vector<2x8x8xbf16>, vector<2x8x8xf32> -> vector<2x8x8xf32>
    "tpu.trace_stop"() : () -> ()
    %55 = vector.shape_cast %46 : vector<8x8xf32> to vector<1x8x8xf32>
    %56 = vector.broadcast %55 : vector<1x8x8xf32> to vector<2x8x8xf32>
    %57 = arith.addf %54, %56 : vector<2x8x8xf32>
    %cst_24 = arith.constant dense<0xFF800000> : vector<2x8xf32>
    %58 = vector.multi_reduction <maximumf>, %57, %cst_24 [2] : vector<2x8x8xf32> to vector<2x8xf32>
    %59 = vector.shape_cast %58 : vector<2x8xf32> to vector<2x8x1xf32>
    %60 = vector.broadcast %59 : vector<2x8x1xf32> to vector<2x8x8xf32>
    %61 = arith.subf %57, %60 : vector<2x8x8xf32>
    %62 = math.exp %61 : vector<2x8x8xf32>
    %cst_25 = arith.constant dense<0.000000e+00> : vector<2x8xf32>
    %63 = vector.multi_reduction <add>, %62, %cst_25 [2] : vector<2x8x8xf32> to vector<2x8xf32>
    %64 = vector.shape_cast %63 : vector<2x8xf32> to vector<2x8x1xf32>
    %65 = tpu.reciprocal %64 {approx = true} : vector<2x8x1xf32> -> vector<2x8x1xf32>
    %66 = vector.broadcast %65 : vector<2x8x1xf32> to vector<2x8x8xf32>
    %67 = arith.mulf %62, %66 : vector<2x8x8xf32>
    %68 = arith.truncf %67 : vector<2x8x8xf32> to vector<2x8x8xbf16>
    "tpu.trace_start"() <{level = 10 : i32, message = "blk,bkd->bld"}> : () -> ()
    %cst_26 = arith.constant dense<0.000000e+00> : vector<2x8x8xf32>
    %69 = tpu.matmul %68, %53, %cst_26 {dimension_numbers = #tpu.dot_dimension_numbers<[2], [1], [1], [2], [0, 0, 0, 1, 1, 2], [0], [0]>} : vector<2x8x8xbf16>, vector<2x8x8xbf16>, vector<2x8x8xf32> -> vector<2x8x8xf32>
    "tpu.trace_stop"() : () -> ()
    %70 = vector.shape_cast %69 : vector<2x8x8xf32> to vector<16x8xf32>
    %71 = arith.truncf %70 : vector<16x8xf32> to vector<16x8xbf16>
    %c0_27 = arith.constant 0 : index
    %c0_28 = arith.constant 0 : index
    %c0_29 = arith.constant 0 : index
    %c0_30 = arith.constant 0 : index
    %72 = vector.load %arg6[%c0_27, %c0_28, %c0_29, %c0_30] : memref<1x4x8x32xbf16, #tpu.memory_space<vmem>>, vector<1x1x8x32xbf16>
    %73 = vector.shape_cast %72 : vector<1x1x8x32xbf16> to vector<8x32xbf16>
    %cst_31 = arith.constant dense<0.000000e+00> : vector<16x32xf32>
    %74 = tpu.matmul %71, %73, %cst_31 {dimension_numbers = #tpu.dot_dimension_numbers<[1], [0], [0], [1], [0, 0, 1, 1], [], []>} : vector<16x8xbf16>, vector<8x32xbf16>, vector<16x32xf32> -> vector<16x32xf32>
    %75 = arith.addf %47, %74 : vector<16x32xf32>
    %76 = vector.extract_strided_slice %41 {offsets = [0, 0, 8], sizes = [2, 8, 8], strides = [1, 1, 1]} : vector<2x8x32xf32> to vector<2x8x8xf32>
    %77 = arith.truncf %76 : vector<2x8x8xf32> to vector<2x8x8xbf16>
    %78 = vector.extract_strided_slice %43 {offsets = [0, 0, 8], sizes = [2, 8, 8], strides = [1, 1, 1]} : vector<2x8x32xf32> to vector<2x8x8xf32>
    %79 = arith.truncf %78 : vector<2x8x8xf32> to vector<2x8x8xbf16>
    %80 = vector.extract_strided_slice %45 {offsets = [0, 0, 8], sizes = [2, 8, 8], strides = [1, 1, 1]} : vector<2x8x32xf32> to vector<2x8x8xf32>
    %81 = arith.truncf %80 : vector<2x8x8xf32> to vector<2x8x8xbf16>
    "tpu.trace_start"() <{level = 10 : i32, message = "bld,bkd->blk"}> : () -> ()
    %cst_32 = arith.constant dense<0.000000e+00> : vector<2x8x8xf32>
    %82 = tpu.matmul %77, %79, %cst_32 {dimension_numbers = #tpu.dot_dimension_numbers<[2], [2], [1], [1], [0, 0, 0, 1, 1, 1], [0], [0]>} : vector<2x8x8xbf16>, vector<2x8x8xbf16>, vector<2x8x8xf32> -> vector<2x8x8xf32>
    "tpu.trace_stop"() : () -> ()
    %83 = vector.shape_cast %46 : vector<8x8xf32> to vector<1x8x8xf32>
    %84 = vector.broadcast %83 : vector<1x8x8xf32> to vector<2x8x8xf32>
    %85 = arith.addf %82, %84 : vector<2x8x8xf32>
    %cst_33 = arith.constant dense<0xFF800000> : vector<2x8xf32>
    %86 = vector.multi_reduction <maximumf>, %85, %cst_33 [2] : vector<2x8x8xf32> to vector<2x8xf32>
    %87 = vector.shape_cast %86 : vector<2x8xf32> to vector<2x8x1xf32>
    %88 = vector.broadcast %87 : vector<2x8x1xf32> to vector<2x8x8xf32>
    %89 = arith.subf %85, %88 : vector<2x8x8xf32>
    %90 = math.exp %89 : vector<2x8x8xf32>
    %cst_34 = arith.constant dense<0.000000e+00> : vector<2x8xf32>
    %91 = vector.multi_reduction <add>, %90, %cst_34 [2] : vector<2x8x8xf32> to vector<2x8xf32>
    %92 = vector.shape_cast %91 : vector<2x8xf32> to vector<2x8x1xf32>
    %93 = tpu.reciprocal %92 {approx = true} : vector<2x8x1xf32> -> vector<2x8x1xf32>
    %94 = vector.broadcast %93 : vector<2x8x1xf32> to vector<2x8x8xf32>
    %95 = arith.mulf %90, %94 : vector<2x8x8xf32>
    %96 = arith.truncf %95 : vector<2x8x8xf32> to vector<2x8x8xbf16>
    "tpu.trace_start"() <{level = 10 : i32, message = "blk,bkd->bld"}> : () -> ()
    %cst_35 = arith.constant dense<0.000000e+00> : vector<2x8x8xf32>
    %97 = tpu.matmul %96, %81, %cst_35 {dimension_numbers = #tpu.dot_dimension_numbers<[2], [1], [1], [2], [0, 0, 0, 1, 1, 2], [0], [0]>} : vector<2x8x8xbf16>, vector<2x8x8xbf16>, vector<2x8x8xf32> -> vector<2x8x8xf32>
    "tpu.trace_stop"() : () -> ()
    %98 = vector.shape_cast %97 : vector<2x8x8xf32> to vector<16x8xf32>
    %99 = arith.truncf %98 : vector<16x8xf32> to vector<16x8xbf16>
    %c0_36 = arith.constant 0 : index
    %c1 = arith.constant 1 : index
    %c0_37 = arith.constant 0 : index
    %c0_38 = arith.constant 0 : index
    %100 = vector.load %arg6[%c0_36, %c1, %c0_37, %c0_38] : memref<1x4x8x32xbf16, #tpu.memory_space<vmem>>, vector<1x1x8x32xbf16>
    %101 = vector.shape_cast %100 : vector<1x1x8x32xbf16> to vector<8x32xbf16>
    %cst_39 = arith.constant dense<0.000000e+00> : vector<16x32xf32>
    %102 = tpu.matmul %99, %101, %cst_39 {dimension_numbers = #tpu.dot_dimension_numbers<[1], [0], [0], [1], [0, 0, 1, 1], [], []>} : vector<16x8xbf16>, vector<8x32xbf16>, vector<16x32xf32> -> vector<16x32xf32>
    %103 = arith.addf %75, %102 : vector<16x32xf32>
    %104 = vector.extract_strided_slice %41 {offsets = [0, 0, 16], sizes = [2, 8, 8], strides = [1, 1, 1]} : vector<2x8x32xf32> to vector<2x8x8xf32>
    %105 = arith.truncf %104 : vector<2x8x8xf32> to vector<2x8x8xbf16>
    %106 = vector.extract_strided_slice %43 {offsets = [0, 0, 16], sizes = [2, 8, 8], strides = [1, 1, 1]} : vector<2x8x32xf32> to vector<2x8x8xf32>
    %107 = arith.truncf %106 : vector<2x8x8xf32> to vector<2x8x8xbf16>
    %108 = vector.extract_strided_slice %45 {offsets = [0, 0, 16], sizes = [2, 8, 8], strides = [1, 1, 1]} : vector<2x8x32xf32> to vector<2x8x8xf32>
    %109 = arith.truncf %108 : vector<2x8x8xf32> to vector<2x8x8xbf16>
    "tpu.trace_start"() <{level = 10 : i32, message = "bld,bkd->blk"}> : () -> ()
    %cst_40 = arith.constant dense<0.000000e+00> : vector<2x8x8xf32>
    %110 = tpu.matmul %105, %107, %cst_40 {dimension_numbers = #tpu.dot_dimension_numbers<[2], [2], [1], [1], [0, 0, 0, 1, 1, 1], [0], [0]>} : vector<2x8x8xbf16>, vector<2x8x8xbf16>, vector<2x8x8xf32> -> vector<2x8x8xf32>
    "tpu.trace_stop"() : () -> ()
    %111 = vector.shape_cast %46 : vector<8x8xf32> to vector<1x8x8xf32>
    %112 = vector.broadcast %111 : vector<1x8x8xf32> to vector<2x8x8xf32>
    %113 = arith.addf %110, %112 : vector<2x8x8xf32>
    %cst_41 = arith.constant dense<0xFF800000> : vector<2x8xf32>
    %114 = vector.multi_reduction <maximumf>, %113, %cst_41 [2] : vector<2x8x8xf32> to vector<2x8xf32>
    %115 = vector.shape_cast %114 : vector<2x8xf32> to vector<2x8x1xf32>
    %116 = vector.broadcast %115 : vector<2x8x1xf32> to vector<2x8x8xf32>
    %117 = arith.subf %113, %116 : vector<2x8x8xf32>
    %118 = math.exp %117 : vector<2x8x8xf32>
    %cst_42 = arith.constant dense<0.000000e+00> : vector<2x8xf32>
    %119 = vector.multi_reduction <add>, %118, %cst_42 [2] : vector<2x8x8xf32> to vector<2x8xf32>
    %120 = vector.shape_cast %119 : vector<2x8xf32> to vector<2x8x1xf32>
    %121 = tpu.reciprocal %120 {approx = true} : vector<2x8x1xf32> -> vector<2x8x1xf32>
    %122 = vector.broadcast %121 : vector<2x8x1xf32> to vector<2x8x8xf32>
    %123 = arith.mulf %118, %122 : vector<2x8x8xf32>
    %124 = arith.truncf %123 : vector<2x8x8xf32> to vector<2x8x8xbf16>
    "tpu.trace_start"() <{level = 10 : i32, message = "blk,bkd->bld"}> : () -> ()
    %cst_43 = arith.constant dense<0.000000e+00> : vector<2x8x8xf32>
    %125 = tpu.matmul %124, %109, %cst_43 {dimension_numbers = #tpu.dot_dimension_numbers<[2], [1], [1], [2], [0, 0, 0, 1, 1, 2], [0], [0]>} : vector<2x8x8xbf16>, vector<2x8x8xbf16>, vector<2x8x8xf32> -> vector<2x8x8xf32>
    "tpu.trace_stop"() : () -> ()
    %126 = vector.shape_cast %125 : vector<2x8x8xf32> to vector<16x8xf32>
    %127 = arith.truncf %126 : vector<16x8xf32> to vector<16x8xbf16>
    %c0_44 = arith.constant 0 : index
    %c2 = arith.constant 2 : index
    %c0_45 = arith.constant 0 : index
    %c0_46 = arith.constant 0 : index
    %128 = vector.load %arg6[%c0_44, %c2, %c0_45, %c0_46] : memref<1x4x8x32xbf16, #tpu.memory_space<vmem>>, vector<1x1x8x32xbf16>
    %129 = vector.shape_cast %128 : vector<1x1x8x32xbf16> to vector<8x32xbf16>
    %cst_47 = arith.constant dense<0.000000e+00> : vector<16x32xf32>
    %130 = tpu.matmul %127, %129, %cst_47 {dimension_numbers = #tpu.dot_dimension_numbers<[1], [0], [0], [1], [0, 0, 1, 1], [], []>} : vector<16x8xbf16>, vector<8x32xbf16>, vector<16x32xf32> -> vector<16x32xf32>
    %131 = arith.addf %103, %130 : vector<16x32xf32>
    %132 = vector.extract_strided_slice %41 {offsets = [0, 0, 24], sizes = [2, 8, 8], strides = [1, 1, 1]} : vector<2x8x32xf32> to vector<2x8x8xf32>
    %133 = arith.truncf %132 : vector<2x8x8xf32> to vector<2x8x8xbf16>
    %134 = vector.extract_strided_slice %43 {offsets = [0, 0, 24], sizes = [2, 8, 8], strides = [1, 1, 1]} : vector<2x8x32xf32> to vector<2x8x8xf32>
    %135 = arith.truncf %134 : vector<2x8x8xf32> to vector<2x8x8xbf16>
    %136 = vector.extract_strided_slice %45 {offsets = [0, 0, 24], sizes = [2, 8, 8], strides = [1, 1, 1]} : vector<2x8x32xf32> to vector<2x8x8xf32>
    %137 = arith.truncf %136 : vector<2x8x8xf32> to vector<2x8x8xbf16>
    "tpu.trace_start"() <{level = 10 : i32, message = "bld,bkd->blk"}> : () -> ()
    %cst_48 = arith.constant dense<0.000000e+00> : vector<2x8x8xf32>
    %138 = tpu.matmul %133, %135, %cst_48 {dimension_numbers = #tpu.dot_dimension_numbers<[2], [2], [1], [1], [0, 0, 0, 1, 1, 1], [0], [0]>} : vector<2x8x8xbf16>, vector<2x8x8xbf16>, vector<2x8x8xf32> -> vector<2x8x8xf32>
    "tpu.trace_stop"() : () -> ()
    %139 = vector.shape_cast %46 : vector<8x8xf32> to vector<1x8x8xf32>
    %140 = vector.broadcast %139 : vector<1x8x8xf32> to vector<2x8x8xf32>
    %141 = arith.addf %138, %140 : vector<2x8x8xf32>
    %cst_49 = arith.constant dense<0xFF800000> : vector<2x8xf32>
    %142 = vector.multi_reduction <maximumf>, %141, %cst_49 [2] : vector<2x8x8xf32> to vector<2x8xf32>
    %143 = vector.shape_cast %142 : vector<2x8xf32> to vector<2x8x1xf32>
    %144 = vector.broadcast %143 : vector<2x8x1xf32> to vector<2x8x8xf32>
    %145 = arith.subf %141, %144 : vector<2x8x8xf32>
    %146 = math.exp %145 : vector<2x8x8xf32>
    %cst_50 = arith.constant dense<0.000000e+00> : vector<2x8xf32>
    %147 = vector.multi_reduction <add>, %146, %cst_50 [2] : vector<2x8x8xf32> to vector<2x8xf32>
    %148 = vector.shape_cast %147 : vector<2x8xf32> to vector<2x8x1xf32>
    %149 = tpu.reciprocal %148 {approx = true} : vector<2x8x1xf32> -> vector<2x8x1xf32>
    %150 = vector.broadcast %149 : vector<2x8x1xf32> to vector<2x8x8xf32>
    %151 = arith.mulf %146, %150 : vector<2x8x8xf32>
    %152 = arith.truncf %151 : vector<2x8x8xf32> to vector<2x8x8xbf16>
    "tpu.trace_start"() <{level = 10 : i32, message = "blk,bkd->bld"}> : () -> ()
    %cst_51 = arith.constant dense<0.000000e+00> : vector<2x8x8xf32>
    %153 = tpu.matmul %152, %137, %cst_51 {dimension_numbers = #tpu.dot_dimension_numbers<[2], [1], [1], [2], [0, 0, 0, 1, 1, 2], [0], [0]>} : vector<2x8x8xbf16>, vector<2x8x8xbf16>, vector<2x8x8xf32> -> vector<2x8x8xf32>
    "tpu.trace_stop"() : () -> ()
    %154 = vector.shape_cast %153 : vector<2x8x8xf32> to vector<16x8xf32>
    %155 = arith.truncf %154 : vector<16x8xf32> to vector<16x8xbf16>
    %c0_52 = arith.constant 0 : index
    %c3 = arith.constant 3 : index
    %c0_53 = arith.constant 0 : index
    %c0_54 = arith.constant 0 : index
    %156 = vector.load %arg6[%c0_52, %c3, %c0_53, %c0_54] : memref<1x4x8x32xbf16, #tpu.memory_space<vmem>>, vector<1x1x8x32xbf16>
    %157 = vector.shape_cast %156 : vector<1x1x8x32xbf16> to vector<8x32xbf16>
    %cst_55 = arith.constant dense<0.000000e+00> : vector<16x32xf32>
    %158 = tpu.matmul %155, %157, %cst_55 {dimension_numbers = #tpu.dot_dimension_numbers<[1], [0], [0], [1], [0, 0, 1, 1], [], []>} : vector<16x8xbf16>, vector<8x32xbf16>, vector<16x32xf32> -> vector<16x32xf32>
    %159 = arith.addf %131, %158 : vector<16x32xf32>
    %160 = arith.addf %3, %159 : vector<16x32xf32>
    %c0_56 = arith.constant 0 : index
    %c0_57 = arith.constant 0 : index
    %c0_58 = arith.constant 0 : index
    %161 = vector.load %arg7[%c0_56, %c0_57, %c0_58] : memref<1x1x32xf32, #tpu.memory_space<vmem>>, vector<1x1x32xf32>
    %162 = vector.shape_cast %161 : vector<1x1x32xf32> to vector<1x32xf32>
    %163 = vector.broadcast %162 : vector<1x32xf32> to vector<16x32xf32>
    %164 = arith.addf %160, %163 : vector<16x32xf32>
    %c0_59 = arith.constant 0 : index
    %c0_60 = arith.constant 0 : index
    %c0_61 = arith.constant 0 : index
    %165 = vector.load %arg8[%c0_59, %c0_60, %c0_61] : memref<1x1x32xf32, #tpu.memory_space<vmem>>, vector<1x1x32xf32>
    %166 = vector.shape_cast %165 : vector<1x1x32xf32> to vector<1x32xf32>
    %c0_62 = arith.constant 0 : index
    %c0_63 = arith.constant 0 : index
    %c0_64 = arith.constant 0 : index
    %167 = vector.load %arg9[%c0_62, %c0_63, %c0_64] : memref<1x1x32xf32, #tpu.memory_space<vmem>>, vector<1x1x32xf32>
    %168 = vector.shape_cast %167 : vector<1x1x32xf32> to vector<1x32xf32>
    %cst_65 = arith.constant dense<0.000000e+00> : vector<16xf32>
    %169 = vector.multi_reduction <add>, %164, %cst_65 [1] : vector<16x32xf32> to vector<16xf32>
    %170 = vector.shape_cast %169 : vector<16xf32> to vector<16x1xf32>
    %cst_66 = arith.constant 3.200000e+01 : f32
    %171 = vector.broadcast %cst_66 : f32 to vector<16x1xf32>
    %172 = arith.divf %170, %171 : vector<16x1xf32>
    %173 = vector.broadcast %172 : vector<16x1xf32> to vector<16x32xf32>
    %174 = arith.subf %164, %173 : vector<16x32xf32>
    %175 = arith.mulf %174, %174 : vector<16x32xf32>
    %cst_67 = arith.constant dense<0.000000e+00> : vector<16xf32>
    %176 = vector.multi_reduction <add>, %175, %cst_67 [1] : vector<16x32xf32> to vector<16xf32>
    %177 = vector.shape_cast %176 : vector<16xf32> to vector<16x1xf32>
    %cst_68 = arith.constant 3.200000e+01 : f32
    %178 = vector.broadcast %cst_68 : f32 to vector<16x1xf32>
    %179 = arith.divf %177, %178 : vector<16x1xf32>
    %180 = vector.broadcast %172 : vector<16x1xf32> to vector<16x32xf32>
    %181 = arith.subf %164, %180 : vector<16x32xf32>
    %cst_69 = arith.constant 9.99999974E-6 : f32
    %182 = vector.broadcast %cst_69 : f32 to vector<16x1xf32>
    %183 = arith.addf %179, %182 : vector<16x1xf32>
    %184 = math.rsqrt %183 : vector<16x1xf32>
    %185 = vector.broadcast %184 : vector<16x1xf32> to vector<16x32xf32>
    %186 = arith.mulf %181, %185 : vector<16x32xf32>
    %187 = vector.broadcast %166 : vector<1x32xf32> to vector<16x32xf32>
    %188 = arith.mulf %186, %187 : vector<16x32xf32>
    %189 = vector.broadcast %168 : vector<1x32xf32> to vector<16x32xf32>
    %190 = arith.addf %188, %189 : vector<16x32xf32>
    %191 = arith.truncf %190 : vector<16x32xf32> to vector<16x32xbf16>
    %c0_70 = arith.constant 0 : index
    %c0_71 = arith.constant 0 : index
    %c0_72 = arith.constant 0 : index
    %192 = vector.load %arg10[%c0_70, %c0_71, %c0_72] : memref<1x32x128xbf16, #tpu.memory_space<vmem>>, vector<1x32x128xbf16>
    %193 = vector.shape_cast %192 : vector<1x32x128xbf16> to vector<32x128xbf16>
    %cst_73 = arith.constant dense<0.000000e+00> : vector<16x128xf32>
    %194 = tpu.matmul %191, %193, %cst_73 {dimension_numbers = #tpu.dot_dimension_numbers<[1], [0], [0], [1], [0, 0, 1, 1], [], []>} : vector<16x32xbf16>, vector<32x128xbf16>, vector<16x128xf32> -> vector<16x128xf32>
    %c0_74 = arith.constant 0 : index
    %c0_75 = arith.constant 0 : index
    %c0_76 = arith.constant 0 : index
    %195 = vector.load %arg11[%c0_74, %c0_75, %c0_76] : memref<1x1x128xf32, #tpu.memory_space<vmem>>, vector<1x1x128xf32>
    %196 = vector.shape_cast %195 : vector<1x1x128xf32> to vector<1x128xf32>
    %197 = vector.broadcast %196 : vector<1x128xf32> to vector<16x128xf32>
    %198 = arith.addf %194, %197 : vector<16x128xf32>
    %cst_77 = arith.constant 1.702000e+00 : f32
    %199 = vector.broadcast %cst_77 : f32 to vector<16x128xf32>
    %200 = arith.mulf %199, %198 : vector<16x128xf32>
    %201 = arith.negf %200 : vector<16x128xf32>
    %202 = math.exp %201 : vector<16x128xf32>
    %cst_78 = arith.constant 1.000000e+00 : f32
    %203 = vector.broadcast %cst_78 : f32 to vector<16x128xf32>
    %204 = arith.addf %203, %202 : vector<16x128xf32>
    %205 = arith.divf %203, %204 : vector<16x128xf32>
    %206 = arith.mulf %198, %205 : vector<16x128xf32>
    %207 = arith.truncf %206 : vector<16x128xf32> to vector<16x128xbf16>
    %c0_79 = arith.constant 0 : index
    %c0_80 = arith.constant 0 : index
    %c0_81 = arith.constant 0 : index
    %208 = vector.load %arg12[%c0_79, %c0_80, %c0_81] : memref<1x128x32xbf16, #tpu.memory_space<vmem>>, vector<1x128x32xbf16>
    %209 = vector.shape_cast %208 : vector<1x128x32xbf16> to vector<128x32xbf16>
    %cst_82 = arith.constant dense<0.000000e+00> : vector<16x32xf32>
    %210 = tpu.matmul %207, %209, %cst_82 {dimension_numbers = #tpu.dot_dimension_numbers<[1], [0], [0], [1], [0, 0, 1, 1], [], []>} : vector<16x128xbf16>, vector<128x32xbf16>, vector<16x32xf32> -> vector<16x32xf32>
    %c0_83 = arith.constant 0 : index
    %c0_84 = arith.constant 0 : index
    %c0_85 = arith.constant 0 : index
    %211 = vector.load %arg13[%c0_83, %c0_84, %c0_85] : memref<1x1x32xf32, #tpu.memory_space<vmem>>, vector<1x1x32xf32>
    %212 = vector.shape_cast %211 : vector<1x1x32xf32> to vector<1x32xf32>
    %213 = vector.broadcast %212 : vector<1x32xf32> to vector<16x32xf32>
    %214 = arith.addf %210, %213 : vector<16x32xf32>
    %215 = arith.addf %164, %214 : vector<16x32xf32>
    %c0_86 = arith.constant 0 : index
    %c0_87 = arith.constant 0 : index
    %216 = vector.load %arg20[%c0_86, %c0_87] : memref<16x32xf32, #tpu.memory_space<vmem>>, vector<16x32xf32>
    tpu.vector_store %arg20[%c0_86, %c0_87], %215 {strides = array<i32>} : memref<16x32xf32, #tpu.memory_space<vmem>>, vector<16x32xf32>,
    %c1_i32 = arith.constant 1 : i32
    %217 = arith.cmpi eq, %arg0, %c1_i32 : i32
    %218 = arith.extui %217 : i1 to i32
    %c0_i32_88 = arith.constant 0 : i32
    %219 = arith.cmpi ne, %218, %c0_i32_88 : i32
    scf.if %219 {
      %c0_89 = arith.constant 0 : index
      %c0_90 = arith.constant 0 : index
      %220 = vector.load %arg14[%c0_89, %c0_90] : memref<1x32xf32, #tpu.memory_space<vmem>>, vector<1x32xf32>
      %c0_91 = arith.constant 0 : index
      %c0_92 = arith.constant 0 : index
      %221 = vector.load %arg15[%c0_91, %c0_92] : memref<1x32xf32, #tpu.memory_space<vmem>>, vector<1x32xf32>
      %cst_93 = arith.constant dense<0.000000e+00> : vector<16xf32>
      %222 = vector.multi_reduction <add>, %215, %cst_93 [1] : vector<16x32xf32> to vector<16xf32>
      %223 = vector.shape_cast %222 : vector<16xf32> to vector<16x1xf32>
      %cst_94 = arith.constant 3.200000e+01 : f32
      %224 = vector.broadcast %cst_94 : f32 to vector<16x1xf32>
      %225 = arith.divf %223, %224 : vector<16x1xf32>
      %226 = vector.broadcast %225 : vector<16x1xf32> to vector<16x32xf32>
      %227 = arith.subf %215, %226 : vector<16x32xf32>
      %228 = arith.mulf %227, %227 : vector<16x32xf32>
      %cst_95 = arith.constant dense<0.000000e+00> : vector<16xf32>
      %229 = vector.multi_reduction <add>, %228, %cst_95 [1] : vector<16x32xf32> to vector<16xf32>
      %230 = vector.shape_cast %229 : vector<16xf32> to vector<16x1xf32>
      %cst_96 = arith.constant 3.200000e+01 : f32
      %231 = vector.broadcast %cst_96 : f32 to vector<16x1xf32>
      %232 = arith.divf %230, %231 : vector<16x1xf32>
      %233 = vector.broadcast %225 : vector<16x1xf32> to vector<16x32xf32>
      %234 = arith.subf %215, %233 : vector<16x32xf32>
      %cst_97 = arith.constant 9.99999974E-6 : f32
      %235 = vector.broadcast %cst_97 : f32 to vector<16x1xf32>
      %236 = arith.addf %232, %235 : vector<16x1xf32>
      %237 = math.rsqrt %236 : vector<16x1xf32>
      %238 = vector.broadcast %237 : vector<16x1xf32> to vector<16x32xf32>
      %239 = arith.mulf %234, %238 : vector<16x32xf32>
      %240 = vector.broadcast %220 : vector<1x32xf32> to vector<16x32xf32>
      %241 = arith.mulf %239, %240 : vector<16x32xf32>
      %242 = vector.broadcast %221 : vector<1x32xf32> to vector<16x32xf32>
      %243 = arith.addf %241, %242 : vector<16x32xf32>
      %244 = vector.shape_cast %243 : vector<16x32xf32> to vector<2x8x32xf32>
      %cst_98 = arith.constant dense<0.000000e+00> : vector<2x32xf32>
      %245 = vector.multi_reduction <add>, %244, %cst_98 [1] : vector<2x8x32xf32> to vector<2x32xf32>
      %cst_99 = arith.constant 8.000000e+00 : f32
      %246 = vector.broadcast %cst_99 : f32 to vector<2x32xf32>
      %247 = arith.divf %245, %246 : vector<2x32xf32>
      %248 = arith.truncf %247 : vector<2x32xf32> to vector<2x32xbf16>
      %c0_100 = arith.constant 0 : index
      %c0_101 = arith.constant 0 : index
      %249 = vector.load %arg16[%c0_100, %c0_101] : memref<32x16xbf16, #tpu.memory_space<vmem>>, vector<32x16xbf16>
      %cst_102 = arith.constant dense<0.000000e+00> : vector<2x16xf32>
      %250 = tpu.matmul %248, %249, %cst_102 {dimension_numbers = #tpu.dot_dimension_numbers<[1], [0], [0], [1], [0, 0, 1, 1], [], []>} : vector<2x32xbf16>, vector<32x16xbf16>, vector<2x16xf32> -> vector<2x16xf32>
      %c0_103 = arith.constant 0 : index
      %c0_104 = arith.constant 0 : index
      %251 = vector.load %arg17[%c0_103, %c0_104] : memref<1x16xf32, #tpu.memory_space<vmem>>, vector<1x16xf32>
      %252 = vector.broadcast %251 : vector<1x16xf32> to vector<2x16xf32>
      %253 = arith.addf %250, %252 : vector<2x16xf32>
      %c0_105 = arith.constant 0 : index
      %c0_106 = arith.constant 0 : index
      %254 = vector.load %arg19[%c0_105, %c0_106] : memref<2x16xf32, #tpu.memory_space<vmem>>, vector<2x16xf32>
      tpu.vector_store %arg19[%c0_105, %c0_106], %253 {strides = array<i32>} : memref<2x16xf32, #tpu.memory_space<vmem>>, vector<2x16xf32>,
    } else {
    }
    return
  }
  func.func @transform_0(%arg0: i32) -> (i32, i32) {
    %c0_i32 = arith.constant 0 : i32
    %c0_i32_0 = arith.constant 0 : i32
    %c0_i32_1 = arith.constant 0 : i32
    return %c0_i32, %c0_i32_0 : i32, i32
  }
  func.func @transform_1(%arg0: i32) -> (i32, i32, i32) {
    %c0_i32 = arith.constant 0 : i32
    %c0_i32_0 = arith.constant 0 : i32
    %c0_i32_1 = arith.constant 0 : i32
    return %arg0, %c0_i32, %c0_i32_0 : i32, i32, i32
  }
  func.func @transform_2(%arg0: i32) -> (i32, i32, i32) {
    %c0_i32 = arith.constant 0 : i32
    %c0_i32_0 = arith.constant 0 : i32
    %c0_i32_1 = arith.constant 0 : i32
    return %arg0, %c0_i32, %c0_i32_0 : i32, i32, i32
  }
  func.func @transform_3(%arg0: i32) -> (i32, i32, i32) {
    %c0_i32 = arith.constant 0 : i32
    %c0_i32_0 = arith.constant 0 : i32
    %c0_i32_1 = arith.constant 0 : i32
    return %arg0, %c0_i32, %c0_i32_0 : i32, i32, i32
  }
  func.func @transform_4(%arg0: i32) -> (i32, i32, i32) {
    %c0_i32 = arith.constant 0 : i32
    %c0_i32_0 = arith.constant 0 : i32
    %c0_i32_1 = arith.constant 0 : i32
    return %arg0, %c0_i32, %c0_i32_0 : i32, i32, i32
  }
  func.func @transform_5(%arg0: i32) -> (i32, i32, i32, i32) {
    %c0_i32 = arith.constant 0 : i32
    %c0_i32_0 = arith.constant 0 : i32
    %c0_i32_1 = arith.constant 0 : i32
    %c0_i32_2 = arith.constant 0 : i32
    return %arg0, %c0_i32, %c0_i32_0, %c0_i32_1 : i32, i32, i32, i32
  }
  func.func @transform_6(%arg0: i32) -> (i32, i32, i32) {
    %c0_i32 = arith.constant 0 : i32
    %c0_i32_0 = arith.constant 0 : i32
    %c0_i32_1 = arith.constant 0 : i32
    return %arg0, %c0_i32, %c0_i32_0 : i32, i32, i32
  }
  func.func @transform_7(%arg0: i32) -> (i32, i32, i32) {
    %c0_i32 = arith.constant 0 : i32
    %c0_i32_0 = arith.constant 0 : i32
    %c0_i32_1 = arith.constant 0 : i32
    return %arg0, %c0_i32, %c0_i32_0 : i32, i32, i32
  }
  func.func @transform_8(%arg0: i32) -> (i32, i32, i32) {
    %c0_i32 = arith.constant 0 : i32
    %c0_i32_0 = arith.constant 0 : i32
    %c0_i32_1 = arith.constant 0 : i32
    return %arg0, %c0_i32, %c0_i32_0 : i32, i32, i32
  }
  func.func @transform_9(%arg0: i32) -> (i32, i32, i32) {
    %c0_i32 = arith.constant 0 : i32
    %c0_i32_0 = arith.constant 0 : i32
    %c0_i32_1 = arith.constant 0 : i32
    return %arg0, %c0_i32, %c0_i32_0 : i32, i32, i32
  }
  func.func @transform_10(%arg0: i32) -> (i32, i32, i32) {
    %c0_i32 = arith.constant 0 : i32
    %c0_i32_0 = arith.constant 0 : i32
    %c0_i32_1 = arith.constant 0 : i32
    return %arg0, %c0_i32, %c0_i32_0 : i32, i32, i32
  }
  func.func @transform_11(%arg0: i32) -> (i32, i32, i32) {
    %c0_i32 = arith.constant 0 : i32
    %c0_i32_0 = arith.constant 0 : i32
    %c0_i32_1 = arith.constant 0 : i32
    return %arg0, %c0_i32, %c0_i32_0 : i32, i32, i32
  }
  func.func @transform_12(%arg0: i32) -> (i32, i32, i32) {
    %c0_i32 = arith.constant 0 : i32
    %c0_i32_0 = arith.constant 0 : i32
    %c0_i32_1 = arith.constant 0 : i32
    return %arg0, %c0_i32, %c0_i32_0 : i32, i32, i32
  }
  func.func @transform_13(%arg0: i32) -> (i32, i32) {
    %c0_i32 = arith.constant 0 : i32
    %c0_i32_0 = arith.constant 0 : i32
    %c0_i32_1 = arith.constant 0 : i32
    return %c0_i32, %c0_i32_0 : i32, i32
  }
  func.func @transform_14(%arg0: i32) -> (i32, i32) {
    %c0_i32 = arith.constant 0 : i32
    %c0_i32_0 = arith.constant 0 : i32
    %c0_i32_1 = arith.constant 0 : i32
    return %c0_i32, %c0_i32_0 : i32, i32
  }
  func.func @transform_15(%arg0: i32) -> (i32, i32) {
    %c0_i32 = arith.constant 0 : i32
    %c0_i32_0 = arith.constant 0 : i32
    %c0_i32_1 = arith.constant 0 : i32
    return %c0_i32, %c0_i32_0 : i32, i32
  }
  func.func @transform_16(%arg0: i32) -> (i32, i32) {
    %c0_i32 = arith.constant 0 : i32
    %c0_i32_0 = arith.constant 0 : i32
    %c0_i32_1 = arith.constant 0 : i32
    return %c0_i32, %c0_i32_0 : i32, i32
  }
  func.func @transform_17(%arg0: i32) -> (i32, i32) {
    %c0_i32 = arith.constant 0 : i32
    %c0_i32_0 = arith.constant 0 : i32
    %c0_i32_1 = arith.constant 0 : i32
    return %c0_i32, %c0_i32_0 : i32, i32
  }
  func.func @transform_18(%arg0: i32) -> (i32, i32) {
    %c0_i32 = arith.constant 0 : i32
    %c0_i32_0 = arith.constant 0 : i32
    %c0_i32_1 = arith.constant 0 : i32
    return %c0_i32, %c0_i32_0 : i32, i32
  }
}

</mosaic_0001>

<llo_original>
// kernel: tpu_custom_call.1
$region0: #{tpu_custom_call.1}
  #allocation0 [shape = 'u32[]', space=smem, size = 0x4, offset = 0x4, fixed_abs, tag = 'smem constant byte address 0x4 - core index']
  #allocation1 [shape = 'u32[144,128]{1,0:T(1,128)}', space=vmem, size = 0x12000, scoped, tag = 'internal scratch']
  #allocation2 [shape = 'f32[16,32]{1,0:T(8,128)}', space=vmem, size = 0x2000, scoped, tag = 'scratch operand']
  %s0 = inlined_call_operand.vmem [shape: f32[16,32], index: 0, kind: input, shape index: {}]
  %s1 = inlined_call_operand.vmem [shape: f32[2,1,32], index: 1, kind: input, shape index: {}]
  %s2 = inlined_call_operand.vmem [shape: f32[2,1,32], index: 2, kind: input, shape index: {}]
  %s3 = inlined_call_operand.vmem [shape: bf16[2,32,96], index: 3, kind: input, shape index: {}]
  %s4 = inlined_call_operand.vmem [shape: f32[2,1,96], index: 4, kind: input, shape index: {}]
  %s5 = inlined_call_operand.vmem [shape: bf16[2,4,8,32], index: 5, kind: input, shape index: {}]
  %s6 = inlined_call_operand.vmem [shape: f32[2,1,32], index: 6, kind: input, shape index: {}]
  %s7 = inlined_call_operand.vmem [shape: f32[2,1,32], index: 7, kind: input, shape index: {}]
  %s8 = inlined_call_operand.vmem [shape: f32[2,1,32], index: 8, kind: input, shape index: {}]
  %s9 = inlined_call_operand.vmem [shape: bf16[2,32,128], index: 9, kind: input, shape index: {}]
  %s10 = inlined_call_operand.vmem [shape: f32[2,1,128], index: 10, kind: input, shape index: {}]
  %s11 = inlined_call_operand.vmem [shape: bf16[2,128,32], index: 11, kind: input, shape index: {}]
  %s12 = inlined_call_operand.vmem [shape: f32[2,1,32], index: 12, kind: input, shape index: {}]
  %s13 = inlined_call_operand.vmem [shape: f32[1,32], index: 13, kind: input, shape index: {}]
  %s14 = inlined_call_operand.vmem [shape: f32[1,32], index: 14, kind: input, shape index: {}]
  %s15 = inlined_call_operand.vmem [shape: bf16[32,16], index: 15, kind: input, shape index: {}]
  %s16 = inlined_call_operand.vmem [shape: f32[1,16], index: 16, kind: input, shape index: {}]
  %s17 = inlined_call_operand.vmem [shape: f32[8,8], index: 17, kind: input, shape index: {}]
  %s18 = inlined_call_operand.hbm [shape: f32[2,16], index: 18, kind: output, shape index: {}]
  %s19 = sld [smem:[#allocation0]]
  $region113: #{tpu_custom_call.1} parent=0
    _
  %s21 = ssub.s32 1, %s19
  %s22 = scalar_select 0, %s21, %s19
  $region1: #{tpu_custom_call.1} parent=0
    #allocation3 [shape = 'u8[1024]{0}', space=vmem, size = 0x400, scoped, tag = 'output window, operand 0, single buffered']
    #allocation4 [shape = 's32[2]{0}', space=sflag, size = 0x8, scoped, tag = 'scoped memory for tpu_custom_call.1']
    %23 = vsyncpa [#allocation4], 0
    loop: start=0, step=1, limit=4
    $region2: #{tpu_custom_call.1} parent=1 // loop_pre_header
      _
    $region3: #{tpu_custom_call.1} parent=1 // loop_header
      %s25 = sphi 0, %s29
      %p26 = scmp.ge.s32.totalorder %s25, 4
      %s33 = sphi 0, %s33
      %s35 = sphi 0, %s33
      %s36 = sphi 0, %s35
      %s50 = sphi 0, %s36
      %s56 = sphi 0, %s58
      %s59 = sphi 0, %s56
      %s60 = sphi 0, %s59
      %s76 = sphi 0, %s60
      %s82 = sphi 0, %s84
      %s85 = sphi 0, %s82
      %s86 = sphi 0, %s85
      %s102 = sphi 0, %s86
      %s108 = sphi 0, %s110
      %s111 = sphi 0, %s108
      %s112 = sphi 0, %s111
      %s128 = sphi 0, %s112
      %s134 = sphi 0, %s136
      %s137 = sphi 0, %s134
      %s138 = sphi 0, %s137
      %s154 = sphi 0, %s138
      %s160 = sphi 0, %s162
      %s163 = sphi 0, %s160
      %s164 = sphi 0, %s163
      %s180 = sphi 0, %s164
      %s186 = sphi 0, %s188
      %s189 = sphi 0, %s186
      %s190 = sphi 0, %s189
      %s206 = sphi 0, %s190
      %s212 = sphi 0, %s214
      %s215 = sphi 0, %s212
      %s216 = sphi 0, %s215
      %s232 = sphi 0, %s216
      %s238 = sphi 0, %s240
      %s241 = sphi 0, %s238
      %s242 = sphi 0, %s241
      %s258 = sphi 0, %s242
      %s264 = sphi 0, %s266
      %s267 = sphi 0, %s264
      %s268 = sphi 0, %s267
      %s284 = sphi 0, %s268
      %s290 = sphi 0, %s292
      %s293 = sphi 0, %s290
      %s294 = sphi 0, %s293
      %s310 = sphi 0, %s294
      %s316 = sphi 0, %s318
      %s319 = sphi 0, %s316
      %s320 = sphi 0, %s319
      %s336 = sphi 0, %s320
      %s342 = sphi 0, %s344
      %s345 = sphi 0, %s342
      %s346 = sphi 0, %s345
      %s362 = sphi 0, %s346
      %s366 = sphi 0, %s366
      %s368 = sphi 0, %s366
      %s369 = sphi 0, %s368
      %s383 = sphi 0, %s369
      %s387 = sphi 0, %s387
      %s389 = sphi 0, %s387
      %s390 = sphi 0, %s389
      %s404 = sphi 0, %s390
      %s408 = sphi 0, %s408
      %s410 = sphi 0, %s408
      %s411 = sphi 0, %s410
      %s425 = sphi 0, %s411
      %s429 = sphi 0, %s429
      %s431 = sphi 0, %s429
      %s432 = sphi 0, %s431
      %s446 = sphi 0, %s432
      %s450 = sphi 0, %s450
      %s452 = sphi 0, %s450
      %s453 = sphi 0, %s452
      %s467 = sphi 0, %s453
      %s471 = sphi 0, %s471
      %s473 = sphi 0, %s471
      %s474 = sphi 0, %s473
      %s488 = sphi 0, %s474
    $region4: #{tpu_custom_call.1} parent=1 // loop_header_branch
      %28 = sbr.rel (%p26) target = $region8
    $region5: #{tpu_custom_call.1} parent=1 // loop_body
      %s30 = ssub.s32 %s25, 1
      %s31 = ssub.s32 %s25, 2
      %s32 = sadd.s32 %s25, 1
      %s34 = sadd.s32 %s33, 1
      %p37 = scmp.eq.s32.totalorder %s25, 1
      %p38 = scmp.ne.s32.totalorder %s33, %s35
      %p39 = scmp.eq.s32.totalorder %s25, 0
      %p40 = por %p38, %p39
      %p41 = scmp.ne.s32.totalorder %s33, %s35
      %p42 = scmp.eq.s32.totalorder %s30, 1
      %p43 = por %p41, %p42
      %p44 = scmp.ne.s32.totalorder %s35, %s36
      %p45 = scmp.eq.s32.totalorder %s30, 0
      %p46 = por %p44, %p45
      %p47 = scmp.ne.s32.totalorder %s35, %s36
      %p48 = scmp.eq.s32.totalorder %s31, 1
      %p49 = por %p47, %p48
      %p51 = scmp.ne.s32.totalorder %s36, %s50
      %p52 = scmp.eq.s32.totalorder %s31, 0
      %p53 = por %p51, %p52
      %s54 = ssub.s32 %s25, %s32
      %p55 = scmp.eq.s32.totalorder %s54, 0
      %s57 = sadd.s32 %s56, 1
      %s58 = scalar_select %p55, %s56, %s57
      %p61 = pneg %p55
      %p62 = scmp.eq.s32.totalorder %s25, 1
      %p63 = por %p61, %p62
      %p64 = scmp.ne.s32.totalorder %s56, %s59
      %p65 = scmp.eq.s32.totalorder %s25, 0
      %p66 = por %p64, %p65
      %p67 = scmp.ne.s32.totalorder %s56, %s59
      %p68 = scmp.eq.s32.totalorder %s30, 1
      %p69 = por %p67, %p68
      %p70 = scmp.ne.s32.totalorder %s59, %s60
      %p71 = scmp.eq.s32.totalorder %s30, 0
      %p72 = por %p70, %p71
      %p73 = scmp.ne.s32.totalorder %s59, %s60
      %p74 = scmp.eq.s32.totalorder %s31, 1
      %p75 = por %p73, %p74
      %p77 = scmp.ne.s32.totalorder %s60, %s76
      %p78 = scmp.eq.s32.totalorder %s31, 0
      %p79 = por %p77, %p78
      %s80 = ssub.s32 %s25, %s32
      %p81 = scmp.eq.s32.totalorder %s80, 0
      %s83 = sadd.s32 %s82, 1
      %s84 = scalar_select %p81, %s82, %s83
      %p87 = pneg %p81
      %p88 = scmp.eq.s32.totalorder %s25, 1
      %p89 = por %p87, %p88
      %p90 = scmp.ne.s32.totalorder %s82, %s85
      %p91 = scmp.eq.s32.totalorder %s25, 0
      %p92 = por %p90, %p91
      %p93 = scmp.ne.s32.totalorder %s82, %s85
      %p94 = scmp.eq.s32.totalorder %s30, 1
      %p95 = por %p93, %p94
      %p96 = scmp.ne.s32.totalorder %s85, %s86
      %p97 = scmp.eq.s32.totalorder %s30, 0
      %p98 = por %p96, %p97
      %p99 = scmp.ne.s32.totalorder %s85, %s86
      %p100 = scmp.eq.s32.totalorder %s31, 1
      %p101 = por %p99, %p100
      %p103 = scmp.ne.s32.totalorder %s86, %s102
      %p104 = scmp.eq.s32.totalorder %s31, 0
      %p105 = por %p103, %p104
      %s106 = ssub.s32 %s25, %s32
      %p107 = scmp.eq.s32.totalorder %s106, 0
      %s109 = sadd.s32 %s108, 1
      %s110 = scalar_select %p107, %s108, %s109
      %p113 = pneg %p107
      %p114 = scmp.eq.s32.totalorder %s25, 1
      %p115 = por %p113, %p114
      %p116 = scmp.ne.s32.totalorder %s108, %s111
      %p117 = scmp.eq.s32.totalorder %s25, 0
      %p118 = por %p116, %p117
      %p119 = scmp.ne.s32.totalorder %s108, %s111
      %p120 = scmp.eq.s32.totalorder %s30, 1
      %p121 = por %p119, %p120
      %p122 = scmp.ne.s32.totalorder %s111, %s112
      %p123 = scmp.eq.s32.totalorder %s30, 0
      %p124 = por %p122, %p123
      %p125 = scmp.ne.s32.totalorder %s111, %s112
      %p126 = scmp.eq.s32.totalorder %s31, 1
      %p127 = por %p125, %p126
      %p129 = scmp.ne.s32.totalorder %s112, %s128
      %p130 = scmp.eq.s32.totalorder %s31, 0
      %p131 = por %p129, %p130
      %s132 = ssub.s32 %s25, %s32
      %p133 = scmp.eq.s32.totalorder %s132, 0
      %s135 = sadd.s32 %s134, 1
      %s136 = scalar_select %p133, %s134, %s135
      %p139 = pneg %p133
      %p140 = scmp.eq.s32.totalorder %s25, 1
      %p141 = por %p139, %p140
      %p142 = scmp.ne.s32.totalorder %s134, %s137
      %p143 = scmp.eq.s32.totalorder %s25, 0
      %p144 = por %p142, %p143
      %p145 = scmp.ne.s32.totalorder %s134, %s137
      %p146 = scmp.eq.s32.totalorder %s30, 1
      %p147 = por %p145, %p146
      %p148 = scmp.ne.s32.totalorder %s137, %s138
      %p149 = scmp.eq.s32.totalorder %s30, 0
      %p150 = por %p148, %p149
      %p151 = scmp.ne.s32.totalorder %s137, %s138
      %p152 = scmp.eq.s32.totalorder %s31, 1
      %p153 = por %p151, %p152
      %p155 = scmp.ne.s32.totalorder %s138, %s154
      %p156 = scmp.eq.s32.totalorder %s31, 0
      %p157 = por %p155, %p156
      %s158 = ssub.s32 %s25, %s32
      %p159 = scmp.eq.s32.totalorder %s158, 0
      %s161 = sadd.s32 %s160, 1
      %s162 = scalar_select %p159, %s160, %s161
      %p165 = pneg %p159
      %p166 = scmp.eq.s32.totalorder %s25, 1
      %p167 = por %p165, %p166
      %p168 = scmp.ne.s32.totalorder %s160, %s163
      %p169 = scmp.eq.s32.totalorder %s25, 0
      %p170 = por %p168, %p169
      %p171 = scmp.ne.s32.totalorder %s160, %s163
      %p172 = scmp.eq.s32.totalorder %s30, 1
      %p173 = por %p171, %p172
      %p174 = scmp.ne.s32.totalorder %s163, %s164
      %p175 = scmp.eq.s32.totalorder %s30, 0
      %p176 = por %p174, %p175
      %p177 = scmp.ne.s32.totalorder %s163, %s164
      %p178 = scmp.eq.s32.totalorder %s31, 1
      %p179 = por %p177, %p178
      %p181 = scmp.ne.s32.totalorder %s164, %s180
      %p182 = scmp.eq.s32.totalorder %s31, 0
      %p183 = por %p181, %p182
      %s184 = ssub.s32 %s25, %s32
      %p185 = scmp.eq.s32.totalorder %s184, 0
      %s187 = sadd.s32 %s186, 1
      %s188 = scalar_select %p185, %s186, %s187
      %p191 = pneg %p185
      %p192 = scmp.eq.s32.totalorder %s25, 1
      %p193 = por %p191, %p192
      %p194 = scmp.ne.s32.totalorder %s186, %s189
      %p195 = scmp.eq.s32.totalorder %s25, 0
      %p196 = por %p194, %p195
      %p197 = scmp.ne.s32.totalorder %s186, %s189
      %p198 = scmp.eq.s32.totalorder %s30, 1
      %p199 = por %p197, %p198
      %p200 = scmp.ne.s32.totalorder %s189, %s190
      %p201 = scmp.eq.s32.totalorder %s30, 0
      %p202 = por %p200, %p201
      %p203 = scmp.ne.s32.totalorder %s189, %s190
      %p204 = scmp.eq.s32.totalorder %s31, 1
      %p205 = por %p203, %p204
      %p207 = scmp.ne.s32.totalorder %s190, %s206
      %p208 = scmp.eq.s32.totalorder %s31, 0
      %p209 = por %p207, %p208
      %s210 = ssub.s32 %s25, %s32
      %p211 = scmp.eq.s32.totalorder %s210, 0
      %s213 = sadd.s32 %s212, 1
      %s214 = scalar_select %p211, %s212, %s213
      %p217 = pneg %p211
      %p218 = scmp.eq.s32.totalorder %s25, 1
      %p219 = por %p217, %p218
      %p220 = scmp.ne.s32.totalorder %s212, %s215
      %p221 = scmp.eq.s32.totalorder %s25, 0
      %p222 = por %p220, %p221
      %p223 = scmp.ne.s32.totalorder %s212, %s215
      %p224 = scmp.eq.s32.totalorder %s30, 1
      %p225 = por %p223, %p224
      %p226 = scmp.ne.s32.totalorder %s215, %s216
      %p227 = scmp.eq.s32.totalorder %s30, 0
      %p228 = por %p226, %p227
      %p229 = scmp.ne.s32.totalorder %s215, %s216
      %p230 = scmp.eq.s32.totalorder %s31, 1
      %p231 = por %p229, %p230
      %p233 = scmp.ne.s32.totalorder %s216, %s232
      %p234 = scmp.eq.s32.totalorder %s31, 0
      %p235 = por %p233, %p234
      %s236 = ssub.s32 %s25, %s32
      %p237 = scmp.eq.s32.totalorder %s236, 0
      %s239 = sadd.s32 %s238, 1
      %s240 = scalar_select %p237, %s238, %s239
      %p243 = pneg %p237
      %p244 = scmp.eq.s32.totalorder %s25, 1
      %p245 = por %p243, %p244
      %p246 = scmp.ne.s32.totalorder %s238, %s241
      %p247 = scmp.eq.s32.totalorder %s25, 0
      %p248 = por %p246, %p247
      %p249 = scmp.ne.s32.totalorder %s238, %s241
      %p250 = scmp.eq.s32.totalorder %s30, 1
      %p251 = por %p249, %p250
      %p252 = scmp.ne.s32.totalorder %s241, %s242
      %p253 = scmp.eq.s32.totalorder %s30, 0
      %p254 = por %p252, %p253
      %p255 = scmp.ne.s32.totalorder %s241, %s242
      %p256 = scmp.eq.s32.totalorder %s31, 1
      %p257 = por %p255, %p256
      %p259 = scmp.ne.s32.totalorder %s242, %s258
      %p260 = scmp.eq.s32.totalorder %s31, 0
      %p261 = por %p259, %p260
      %s262 = ssub.s32 %s25, %s32
      %p263 = scmp.eq.s32.totalorder %s262, 0
      %s265 = sadd.s32 %s264, 1
      %s266 = scalar_select %p263, %s264, %s265
      %p269 = pneg %p263
      %p270 = scmp.eq.s32.totalorder %s25, 1
      %p271 = por %p269, %p270
      %p272 = scmp.ne.s32.totalorder %s264, %s267
      %p273 = scmp.eq.s32.totalorder %s25, 0
      %p274 = por %p272, %p273
      %p275 = scmp.ne.s32.totalorder %s264, %s267
      %p276 = scmp.eq.s32.totalorder %s30, 1
      %p277 = por %p275, %p276
      %p278 = scmp.ne.s32.totalorder %s267, %s268
      %p279 = scmp.eq.s32.totalorder %s30, 0
      %p280 = por %p278, %p279
      %p281 = scmp.ne.s32.totalorder %s267, %s268
      %p282 = scmp.eq.s32.totalorder %s31, 1
      %p283 = por %p281, %p282
      %p285 = scmp.ne.s32.totalorder %s268, %s284
      %p286 = scmp.eq.s32.totalorder %s31, 0
      %p287 = por %p285, %p286
      %s288 = ssub.s32 %s25, %s32
      %p289 = scmp.eq.s32.totalorder %s288, 0
      %s291 = sadd.s32 %s290, 1
      %s292 = scalar_select %p289, %s290, %s291
      %p295 = pneg %p289
      %p296 = scmp.eq.s32.totalorder %s25, 1
      %p297 = por %p295, %p296
      %p298 = scmp.ne.s32.totalorder %s290, %s293
      %p299 = scmp.eq.s32.totalorder %s25, 0
      %p300 = por %p298, %p299
      %p301 = scmp.ne.s32.totalorder %s290, %s293
      %p302 = scmp.eq.s32.totalorder %s30, 1
      %p303 = por %p301, %p302
      %p304 = scmp.ne.s32.totalorder %s293, %s294
      %p305 = scmp.eq.s32.totalorder %s30, 0
      %p306 = por %p304, %p305
      %p307 = scmp.ne.s32.totalorder %s293, %s294
      %p308 = scmp.eq.s32.totalorder %s31, 1
      %p309 = por %p307, %p308
      %p311 = scmp.ne.s32.totalorder %s294, %s310
      %p312 = scmp.eq.s32.totalorder %s31, 0
      %p313 = por %p311, %p312
      %s314 = ssub.s32 %s25, %s32
      %p315 = scmp.eq.s32.totalorder %s314, 0
      %s317 = sadd.s32 %s316, 1
      %s318 = scalar_select %p315, %s316, %s317
      %p321 = pneg %p315
      %p322 = scmp.eq.s32.totalorder %s25, 1
      %p323 = por %p321, %p322
      %p324 = scmp.ne.s32.totalorder %s316, %s319
      %p325 = scmp.eq.s32.totalorder %s25, 0
      %p326 = por %p324, %p325
      %p327 = scmp.ne.s32.totalorder %s316, %s319
      %p328 = scmp.eq.s32.totalorder %s30, 1
      %p329 = por %p327, %p328
      %p330 = scmp.ne.s32.totalorder %s319, %s320
      %p331 = scmp.eq.s32.totalorder %s30, 0
      %p332 = por %p330, %p331
      %p333 = scmp.ne.s32.totalorder %s319, %s320
      %p334 = scmp.eq.s32.totalorder %s31, 1
      %p335 = por %p333, %p334
      %p337 = scmp.ne.s32.totalorder %s320, %s336
      %p338 = scmp.eq.s32.totalorder %s31, 0
      %p339 = por %p337, %p338
      %s340 = ssub.s32 %s25, %s32
      %p341 = scmp.eq.s32.totalorder %s340, 0
      %s343 = sadd.s32 %s342, 1
      %s344 = scalar_select %p341, %s342, %s343
      %p347 = pneg %p341
      %p348 = scmp.eq.s32.totalorder %s25, 1
      %p349 = por %p347, %p348
      %p350 = scmp.ne.s32.totalorder %s342, %s345
      %p351 = scmp.eq.s32.totalorder %s25, 0
      %p352 = por %p350, %p351
      %p353 = scmp.ne.s32.totalorder %s342, %s345
      %p354 = scmp.eq.s32.totalorder %s30, 1
      %p355 = por %p353, %p354
      %p356 = scmp.ne.s32.totalorder %s345, %s346
      %p357 = scmp.eq.s32.totalorder %s30, 0
      %p358 = por %p356, %p357
      %p359 = scmp.ne.s32.totalorder %s345, %s346
      %p360 = scmp.eq.s32.totalorder %s31, 1
      %p361 = por %p359, %p360
      %p363 = scmp.ne.s32.totalorder %s346, %s362
      %p364 = scmp.eq.s32.totalorder %s31, 0
      %p365 = por %p363, %p364
      %s367 = sadd.s32 %s366, 1
      %p370 = scmp.eq.s32.totalorder %s25, 1
      %p371 = scmp.ne.s32.totalorder %s366, %s368
      %p372 = scmp.eq.s32.totalorder %s25, 0
      %p373 = por %p371, %p372
      %p374 = scmp.ne.s32.totalorder %s366, %s368
      %p375 = scmp.eq.s32.totalorder %s30, 1
      %p376 = por %p374, %p375
      %p377 = scmp.ne.s32.totalorder %s368, %s369
      %p378 = scmp.eq.s32.totalorder %s30, 0
      %p379 = por %p377, %p378
      %p380 = scmp.ne.s32.totalorder %s368, %s369
      %p381 = scmp.eq.s32.totalorder %s31, 1
      %p382 = por %p380, %p381
      %p384 = scmp.ne.s32.totalorder %s369, %s383
      %p385 = scmp.eq.s32.totalorder %s31, 0
      %p386 = por %p384, %p385
      %s388 = sadd.s32 %s387, 1
      %p391 = scmp.eq.s32.totalorder %s25, 1
      %p392 = scmp.ne.s32.totalorder %s387, %s389
      %p393 = scmp.eq.s32.totalorder %s25, 0
      %p394 = por %p392, %p393
      %p395 = scmp.ne.s32.totalorder %s387, %s389
      %p396 = scmp.eq.s32.totalorder %s30, 1
      %p397 = por %p395, %p396
      %p398 = scmp.ne.s32.totalorder %s389, %s390
      %p399 = scmp.eq.s32.totalorder %s30, 0
      %p400 = por %p398, %p399
      %p401 = scmp.ne.s32.totalorder %s389, %s390
      %p402 = scmp.eq.s32.totalorder %s31, 1
      %p403 = por %p401, %p402
      %p405 = scmp.ne.s32.totalorder %s390, %s404
      %p406 = scmp.eq.s32.totalorder %s31, 0
      %p407 = por %p405, %p406
      %s409 = sadd.s32 %s408, 1
      %p412 = scmp.eq.s32.totalorder %s25, 1
      %p413 = scmp.ne.s32.totalorder %s408, %s410
      %p414 = scmp.eq.s32.totalorder %s25, 0
      %p415 = por %p413, %p414
      %p416 = scmp.ne.s32.totalorder %s408, %s410
      %p417 = scmp.eq.s32.totalorder %s30, 1
      %p418 = por %p416, %p417
      %p419 = scmp.ne.s32.totalorder %s410, %s411
      %p420 = scmp.eq.s32.totalorder %s30, 0
      %p421 = por %p419, %p420
      %p422 = scmp.ne.s32.totalorder %s410, %s411
      %p423 = scmp.eq.s32.totalorder %s31, 1
      %p424 = por %p422, %p423
      %p426 = scmp.ne.s32.totalorder %s411, %s425
      %p427 = scmp.eq.s32.totalorder %s31, 0
      %p428 = por %p426, %p427
      %s430 = sadd.s32 %s429, 1
      %p433 = scmp.eq.s32.totalorder %s25, 1
      %p434 = scmp.ne.s32.totalorder %s429, %s431
      %p435 = scmp.eq.s32.totalorder %s25, 0
      %p436 = por %p434, %p435
      %p437 = scmp.ne.s32.totalorder %s429, %s431
      %p438 = scmp.eq.s32.totalorder %s30, 1
      %p439 = por %p437, %p438
      %p440 = scmp.ne.s32.totalorder %s431, %s432
      %p441 = scmp.eq.s32.totalorder %s30, 0
      %p442 = por %p440, %p441
      %p443 = scmp.ne.s32.totalorder %s431, %s432
      %p444 = scmp.eq.s32.totalorder %s31, 1
      %p445 = por %p443, %p444
      %p447 = scmp.ne.s32.totalorder %s432, %s446
      %p448 = scmp.eq.s32.totalorder %s31, 0
      %p449 = por %p447, %p448
      %s451 = sadd.s32 %s450, 1
      %p454 = scmp.eq.s32.totalorder %s25, 1
      %p455 = scmp.ne.s32.totalorder %s450, %s452
      %p456 = scmp.eq.s32.totalorder %s25, 0
      %p457 = por %p455, %p456
      %p458 = scmp.ne.s32.totalorder %s450, %s452
      %p459 = scmp.eq.s32.totalorder %s30, 1
      %p460 = por %p458, %p459
      %p461 = scmp.ne.s32.totalorder %s452, %s453
      %p462 = scmp.eq.s32.totalorder %s30, 0
      %p463 = por %p461, %p462
      %p464 = scmp.ne.s32.totalorder %s452, %s453
      %p465 = scmp.eq.s32.totalorder %s31, 1
      %p466 = por %p464, %p465
      %p468 = scmp.ne.s32.totalorder %s453, %s467
      %p469 = scmp.eq.s32.totalorder %s31, 0
      %p470 = por %p468, %p469
      %s472 = sadd.s32 %s471, 1
      %p475 = scmp.eq.s32.totalorder %s25, 1
      %p476 = scmp.ne.s32.totalorder %s471, %s473
      %p477 = scmp.eq.s32.totalorder %s25, 0
      %p478 = por %p476, %p477
      %p479 = scmp.ne.s32.totalorder %s471, %s473
      %p480 = scmp.eq.s32.totalorder %s30, 1
      %p481 = por %p479, %p480
      %p482 = scmp.ne.s32.totalorder %s473, %s474
      %p483 = scmp.eq.s32.totalorder %s30, 0
      %p484 = por %p482, %p483
      %p485 = scmp.ne.s32.totalorder %s473, %s474
      %p486 = scmp.eq.s32.totalorder %s31, 1
      %p487 = por %p485, %p486
      %p489 = scmp.ne.s32.totalorder %s474, %s488
      %p490 = scmp.eq.s32.totalorder %s31, 0
      %p491 = por %p489, %p490
      %p492 = scmp.le.s32.totalorder 1, %s25
      %p493 = scmp.lt.s32.totalorder %s25, 3
      %p494 = pnand %p492, %p493
      %p495 = pneg %p494
      // Predicated region
      $region9: #{tpu_custom_call.1} parent=5 // pred_check
        _
      $region10: #{tpu_custom_call.1} parent=5 // pred_check_branch
        %497 = sbr.rel (%p494) target = $region12
      $region11: #{tpu_custom_call.1} parent=5 // pred_region
        %s498 = ssub.s32 %s25, 1
        // Predicated region
        $region13: #{tpu_custom_call.1} parent=11 // pred_check
          %p499 = pneg %p46
        $region14: #{tpu_custom_call.1} parent=11 // pred_check_branch
          %501 = sbr.rel (%p499) target = $region16
        $region15: #{tpu_custom_call.1} parent=11 // pred_region
          _
        $region16: #{tpu_custom_call.1} parent=11 // pred_fallthru
          _
        // Predicated region
        $region17: #{tpu_custom_call.1} parent=11 // pred_check
          %p502 = pneg %p379
        $region18: #{tpu_custom_call.1} parent=11 // pred_check_branch
          %504 = sbr.rel (%p502) target = $region20
        $region19: #{tpu_custom_call.1} parent=11 // pred_region
          _
        $region20: #{tpu_custom_call.1} parent=11 // pred_fallthru
          _
        // Predicated region
        $region21: #{tpu_custom_call.1} parent=11 // pred_check
          %p505 = pneg %p400
        $region22: #{tpu_custom_call.1} parent=11 // pred_check_branch
          %507 = sbr.rel (%p505) target = $region24
        $region23: #{tpu_custom_call.1} parent=11 // pred_region
          _
        $region24: #{tpu_custom_call.1} parent=11 // pred_fallthru
          _
        // Predicated region
        $region25: #{tpu_custom_call.1} parent=11 // pred_check
          %p508 = pneg %p421
        $region26: #{tpu_custom_call.1} parent=11 // pred_check_branch
          %510 = sbr.rel (%p508) target = $region28
        $region27: #{tpu_custom_call.1} parent=11 // pred_region
          _
        $region28: #{tpu_custom_call.1} parent=11 // pred_fallthru
          _
        // Predicated region
        $region29: #{tpu_custom_call.1} parent=11 // pred_check
          %p511 = pneg %p442
        $region30: #{tpu_custom_call.1} parent=11 // pred_check_branch
          %513 = sbr.rel (%p511) target = $region32
        $region31: #{tpu_custom_call.1} parent=11 // pred_region
          _
        $region32: #{tpu_custom_call.1} parent=11 // pred_fallthru
          _
        // Predicated region
        $region33: #{tpu_custom_call.1} parent=11 // pred_check
          %p514 = pneg %p463
        $region34: #{tpu_custom_call.1} parent=11 // pred_check_branch
          %516 = sbr.rel (%p514) target = $region36
        $region35: #{tpu_custom_call.1} parent=11 // pred_region
          _
        $region36: #{tpu_custom_call.1} parent=11 // pred_fallthru
          _
      $region12: #{tpu_custom_call.1} parent=5 // pred_fallthru
        _
      %p517 = scmp.lt.s32.totalorder %s25, 2
      // Predicated region
      $region37: #{tpu_custom_call.1} parent=5 // pred_check
        %p518 = pneg %p517
      $region38: #{tpu_custom_call.1} parent=5 // pred_check_branch
        %520 = sbr.rel (%p518) target = $region40
      $region39: #{tpu_custom_call.1} parent=5 // pred_region
        // Predicated region
        $region41: #{tpu_custom_call.1} parent=39 // pred_check
          %p521 = pneg %p66
        $region42: #{tpu_custom_call.1} parent=39 // pred_check_branch
          %523 = sbr.rel (%p521) target = $region44
        $region43: #{tpu_custom_call.1} parent=39 // pred_region
          %p524 = scmp.lt.s32.totalorder %s25, 1
          %s525 = scalar_select %p524, %s25, 1
          %s526 = scalar_lea.vmem %s1, %s525
        $region44: #{tpu_custom_call.1} parent=39 // pred_fallthru
          _
        // Predicated region
        $region45: #{tpu_custom_call.1} parent=39 // pred_check
          %p527 = pneg %p92
        $region46: #{tpu_custom_call.1} parent=39 // pred_check_branch
          %529 = sbr.rel (%p527) target = $region48
        $region47: #{tpu_custom_call.1} parent=39 // pred_region
          %p530 = scmp.lt.s32.totalorder %s25, 1
          %s531 = scalar_select %p530, %s25, 1
          %s532 = scalar_lea.vmem %s2, %s531
        $region48: #{tpu_custom_call.1} parent=39 // pred_fallthru
          _
        // Predicated region
        $region49: #{tpu_custom_call.1} parent=39 // pred_check
          %p533 = pneg %p118
        $region50: #{tpu_custom_call.1} parent=39 // pred_check_branch
          %535 = sbr.rel (%p533) target = $region52
        $region51: #{tpu_custom_call.1} parent=39 // pred_region
          %p536 = scmp.lt.s32.totalorder %s25, 1
          %s537 = scalar_select %p536, %s25, 1
          %s538 = smul.addr %s537, 4
          %s539 = smul.addr %s538, 4
          %s540 = scalar_lea.vmem %s3, %s539
        $region52: #{tpu_custom_call.1} parent=39 // pred_fallthru
          _
        // Predicated region
        $region53: #{tpu_custom_call.1} parent=39 // pred_check
          %p541 = pneg %p144
        $region54: #{tpu_custom_call.1} parent=39 // pred_check_branch
          %543 = sbr.rel (%p541) target = $region56
        $region55: #{tpu_custom_call.1} parent=39 // pred_region
          %p544 = scmp.lt.s32.totalorder %s25, 1
          %s545 = scalar_select %p544, %s25, 1
          %s546 = scalar_lea.vmem %s4, %s545
        $region56: #{tpu_custom_call.1} parent=39 // pred_fallthru
          _
        // Predicated region
        $region57: #{tpu_custom_call.1} parent=39 // pred_check
          %p547 = pneg %p170
        $region58: #{tpu_custom_call.1} parent=39 // pred_check_branch
          %549 = sbr.rel (%p547) target = $region60
        $region59: #{tpu_custom_call.1} parent=39 // pred_region
          %p550 = scmp.lt.s32.totalorder %s25, 1
          %s551 = scalar_select %p550, %s25, 1
          %s552 = smul.addr %s551, 4
          %s553 = smul.addr %s552, 4
          %s554 = scalar_lea.vmem %s5, %s553
        $region60: #{tpu_custom_call.1} parent=39 // pred_fallthru
          _
        // Predicated region
        $region61: #{tpu_custom_call.1} parent=39 // pred_check
          %p555 = pneg %p196
        $region62: #{tpu_custom_call.1} parent=39 // pred_check_branch
          %557 = sbr.rel (%p555) target = $region64
        $region63: #{tpu_custom_call.1} parent=39 // pred_region
          %p558 = scmp.lt.s32.totalorder %s25, 1
          %s559 = scalar_select %p558, %s25, 1
          %s560 = scalar_lea.vmem %s6, %s559
        $region64: #{tpu_custom_call.1} parent=39 // pred_fallthru
          _
        // Predicated region
        $region65: #{tpu_custom_call.1} parent=39 // pred_check
          %p561 = pneg %p222
        $region66: #{tpu_custom_call.1} parent=39 // pred_check_branch
          %563 = sbr.rel (%p561) target = $region68
        $region67: #{tpu_custom_call.1} parent=39 // pred_region
          %p564 = scmp.lt.s32.totalorder %s25, 1
          %s565 = scalar_select %p564, %s25, 1
          %s566 = scalar_lea.vmem %s7, %s565
        $region68: #{tpu_custom_call.1} parent=39 // pred_fallthru
          _
        // Predicated region
        $region69: #{tpu_custom_call.1} parent=39 // pred_check
          %p567 = pneg %p248
        $region70: #{tpu_custom_call.1} parent=39 // pred_check_branch
          %569 = sbr.rel (%p567) target = $region72
        $region71: #{tpu_custom_call.1} parent=39 // pred_region
          %p570 = scmp.lt.s32.totalorder %s25, 1
          %s571 = scalar_select %p570, %s25, 1
          %s572 = scalar_lea.vmem %s8, %s571
        $region72: #{tpu_custom_call.1} parent=39 // pred_fallthru
          _
        // Predicated region
        $region73: #{tpu_custom_call.1} parent=39 // pred_check
          %p573 = pneg %p274
        $region74: #{tpu_custom_call.1} parent=39 // pred_check_branch
          %575 = sbr.rel (%p573) target = $region76
        $region75: #{tpu_custom_call.1} parent=39 // pred_region
          %p576 = scmp.lt.s32.totalorder %s25, 1
          %s577 = scalar_select %p576, %s25, 1
          %s578 = smul.addr %s577, 4
          %s579 = smul.addr %s578, 4
          %s580 = scalar_lea.vmem %s9, %s579
        $region76: #{tpu_custom_call.1} parent=39 // pred_fallthru
          _
        // Predicated region
        $region77: #{tpu_custom_call.1} parent=39 // pred_check
          %p581 = pneg %p300
        $region78: #{tpu_custom_call.1} parent=39 // pred_check_branch
          %583 = sbr.rel (%p581) target = $region80
        $region79: #{tpu_custom_call.1} parent=39 // pred_region
          %p584 = scmp.lt.s32.totalorder %s25, 1
          %s585 = scalar_select %p584, %s25, 1
          %s586 = scalar_lea.vmem %s10, %s585
        $region80: #{tpu_custom_call.1} parent=39 // pred_fallthru
          _
        // Predicated region
        $region81: #{tpu_custom_call.1} parent=39 // pred_check
          %p587 = pneg %p326
        $region82: #{tpu_custom_call.1} parent=39 // pred_check_branch
          %589 = sbr.rel (%p587) target = $region84
        $region83: #{tpu_custom_call.1} parent=39 // pred_region
          %p590 = scmp.lt.s32.totalorder %s25, 1
          %s591 = scalar_select %p590, %s25, 1
          %s592 = smul.addr %s591, 16
          %s593 = smul.addr %s592, 4
          %s594 = scalar_lea.vmem %s11, %s593
        $region84: #{tpu_custom_call.1} parent=39 // pred_fallthru
          _
        // Predicated region
        $region85: #{tpu_custom_call.1} parent=39 // pred_check
          %p595 = pneg %p352
        $region86: #{tpu_custom_call.1} parent=39 // pred_check_branch
          %597 = sbr.rel (%p595) target = $region88
        $region87: #{tpu_custom_call.1} parent=39 // pred_region
          %p598 = scmp.lt.s32.totalorder %s25, 1
          %s599 = scalar_select %p598, %s25, 1
          %s600 = scalar_lea.vmem %s12, %s599
        $region88: #{tpu_custom_call.1} parent=39 // pred_fallthru
          _
      $region40: #{tpu_custom_call.1} parent=5 // pred_fallthru
        _
      %p601 = scmp.le.s32.totalorder 1, %s25
      %p602 = scmp.lt.s32.totalorder %s25, 3
      %p603 = pnand %p601, %p602
      %p604 = pneg %p603
      // Predicated region
      $region89: #{tpu_custom_call.1} parent=5 // pred_check
        _
      $region90: #{tpu_custom_call.1} parent=5 // pred_check_branch
        %606 = sbr.rel (%p603) target = $region92
      $region91: #{tpu_custom_call.1} parent=5 // pred_region
        %s607 = ssub.s32 %s25, 1
        %p608 = pneg %p46
        %p609 = pneg %p43
        %p610 = scmp.lt.s32.totalorder %s30, 1
        %s611 = scalar_select %p610, %s30, 1
        %s612 = scalar_lea.vmem %s1, %s611
        %p613 = pneg %p72
        %p614 = pneg %p69
        %p615 = scmp.lt.s32.totalorder %s30, 1
        %s616 = scalar_select %p615, %s30, 1
        %s617 = scalar_lea.vmem %s2, %s616
        %p618 = pneg %p98
        %p619 = pneg %p95
        %p620 = scmp.lt.s32.totalorder %s30, 1
        %s621 = scalar_select %p620, %s30, 1
        %s622 = smul.addr %s621, 4
        %s623 = smul.addr %s622, 4
        %s624 = scalar_lea.vmem %s3, %s623
        %p625 = pneg %p124
        %p626 = pneg %p121
        %p627 = scmp.lt.s32.totalorder %s30, 1
        %s628 = scalar_select %p627, %s30, 1
        %s629 = scalar_lea.vmem %s4, %s628
        %p630 = pneg %p150
        %p631 = pneg %p147
        %p632 = scmp.lt.s32.totalorder %s30, 1
        %s633 = scalar_select %p632, %s30, 1
        %s634 = smul.addr %s633, 4
        %s635 = smul.addr %s634, 4
        %s636 = scalar_lea.vmem %s5, %s635
        %p637 = pneg %p176
        %p638 = pneg %p173
        %p639 = scmp.lt.s32.totalorder %s30, 1
        %s640 = scalar_select %p639, %s30, 1
        %s641 = scalar_lea.vmem %s6, %s640
        %p642 = pneg %p202
        %p643 = pneg %p199
        %p644 = scmp.lt.s32.totalorder %s30, 1
        %s645 = scalar_select %p644, %s30, 1
        %s646 = scalar_lea.vmem %s7, %s645
        %p647 = pneg %p228
        %p648 = pneg %p225
        %p649 = scmp.lt.s32.totalorder %s30, 1
        %s650 = scalar_select %p649, %s30, 1
        %s651 = scalar_lea.vmem %s8, %s650
        %p652 = pneg %p254
        %p653 = pneg %p251
        %p654 = scmp.lt.s32.totalorder %s30, 1
        %s655 = scalar_select %p654, %s30, 1
        %s656 = smul.addr %s655, 4
        %s657 = smul.addr %s656, 4
        %s658 = scalar_lea.vmem %s9, %s657
        %p659 = pneg %p280
        %p660 = pneg %p277
        %p661 = scmp.lt.s32.totalorder %s30, 1
        %s662 = scalar_select %p661, %s30, 1
        %s663 = scalar_lea.vmem %s10, %s662
        %p664 = pneg %p306
        %p665 = pneg %p303
        %p666 = scmp.lt.s32.totalorder %s30, 1
        %s667 = scalar_select %p666, %s30, 1
        %s668 = smul.addr %s667, 16
        %s669 = smul.addr %s668, 4
        %s670 = scalar_lea.vmem %s11, %s669
        %p671 = pneg %p332
        %p672 = pneg %p329
        %p673 = scmp.lt.s32.totalorder %s30, 1
        %s674 = scalar_select %p673, %s30, 1
        %s675 = scalar_lea.vmem %s12, %s674
        %p676 = pneg %p358
        %p677 = pneg %p355
        %p678 = pneg %p379
        %p679 = pneg %p376
        %p680 = pneg %p400
        %p681 = pneg %p397
        %p682 = pneg %p421
        %p683 = pneg %p418
        %p684 = pneg %p442
        %p685 = pneg %p439
        %p686 = pneg %p463
        %p687 = pneg %p460
        %p688 = pneg %p484
        %p689 = pneg %p481
        %p690 = scmp.lt.s32.totalorder %s30, 1
        %s691 = scalar_select %p690, %s30, 1
        %s692 = scalar_lea.vmem %s1, %s691
        %p693 = scmp.lt.s32.totalorder %s30, 1
        %s694 = scalar_select %p693, %s30, 1
        %s695 = scalar_lea.vmem %s2, %s694
        %p696 = scmp.lt.s32.totalorder %s30, 1
        %s697 = scalar_select %p696, %s30, 1
        %s698 = smul.addr %s697, 4
        %s699 = smul.addr %s698, 4
        %s700 = scalar_lea.vmem %s3, %s699
        %p701 = scmp.lt.s32.totalorder %s30, 1
        %s702 = scalar_select %p701, %s30, 1
        %s703 = scalar_lea.vmem %s4, %s702
        %p704 = scmp.lt.s32.totalorder %s30, 1
        %s705 = scalar_select %p704, %s30, 1
        %s706 = smul.addr %s705, 4
        %s707 = smul.addr %s706, 4
        %s708 = scalar_lea.vmem %s5, %s707
        %p709 = scmp.lt.s32.totalorder %s30, 1
        %s710 = scalar_select %p709, %s30, 1
        %s711 = scalar_lea.vmem %s6, %s710
        %p712 = scmp.lt.s32.totalorder %s30, 1
        %s713 = scalar_select %p712, %s30, 1
        %s714 = scalar_lea.vmem %s7, %s713
        %p715 = scmp.lt.s32.totalorder %s30, 1
        %s716 = scalar_select %p715, %s30, 1
        %s717 = scalar_lea.vmem %s8, %s716
        %p718 = scmp.lt.s32.totalorder %s30, 1
        %s719 = scalar_select %p718, %s30, 1
        %s720 = smul.addr %s719, 4
        %s721 = smul.addr %s720, 4
        %s722 = scalar_lea.vmem %s9, %s721
        %p723 = scmp.lt.s32.totalorder %s30, 1
        %s724 = scalar_select %p723, %s30, 1
        %s725 = scalar_lea.vmem %s10, %s724
        %p726 = scmp.lt.s32.totalorder %s30, 1
        %s727 = scalar_select %p726, %s30, 1
        %s728 = smul.addr %s727, 16
        %s729 = smul.addr %s728, 4
        %s730 = scalar_lea.vmem %s11, %s729
        %p731 = scmp.lt.s32.totalorder %s30, 1
        %s732 = scalar_select %p731, %s30, 1
        %s733 = scalar_lea.vmem %s12, %s732
        %p735 = scmp.eq.s32.totalorder %s30, 0
        // Predicated region
        $region93: #{tpu_custom_call.1} parent=91 // pred_check
          %p736 = pneg %p735
        $region94: #{tpu_custom_call.1} parent=91 // pred_check_branch
          %738 = sbr.rel (%p736) target = $region96
        $region95: #{tpu_custom_call.1} parent=91 // pred_region
          %v739 = vld [vmem:[%s0] sm:$0xff]
          %v740 = vld [vmem:[%s0 + $0x8] sm:$0xff]
          %vm741 = vcmask 261120
          %742 = vst.msk [vmem:[#allocation2] sm:$0xff] %vm741, %v739
          %743 = vst.msk [vmem:[#allocation2 + $0x8] sm:$0xff] %vm741, %v740
        $region96: #{tpu_custom_call.1} parent=91 // pred_fallthru
          _
        %v744 = vld [vmem:[#allocation2] sm:$0xff]
        %v745 = vld [vmem:[#allocation2 + $0x8] sm:$0xff]
        %v746 = vld [vmem:[%s692] sm:$0x1]
        %v747 = vld [vmem:[%s695] sm:$0x1]
        %vm748 = vcmask 261120
        %v749 = vsel %vm748, %v744, 0.0
        %750 = vadd.xlane.f32.xlu0 %v749
        %v751 = vpop.xlane.xlu0 %750
        %v752 = vsel %vm748, %v745, 0.0
        %753 = vadd.xlane.f32.xlu0 %v752
        %v754 = vpop.xlane.xlu0 %753
        %v755 = vrcp.pop 32.0
        %v756 = vmul.f32 %v751, %v755
        %v757 = vmul.f32 %v754, %v755
        %v758 = vsub.f32 %v744, %v756
        %v759 = vsub.f32 %v745, %v757
        %v760 = vmul.f32 %v758, %v758
        %v761 = vmul.f32 %v759, %v759
        %v762 = vsel %vm748, %v760, 0.0
        %763 = vadd.xlane.f32.xlu0 %v762
        %v764 = vpop.xlane.xlu0 %763
        %v765 = vsel %vm748, %v761, 0.0
        %766 = vadd.xlane.f32.xlu0 %v765
        %v767 = vpop.xlane.xlu0 %766
        %v768 = vmul.f32 %v764, %v755
        %v769 = vmul.f32 %v767, %v755
        %v770 = vadd.f32 %v768, 1e-05
        %v771 = vadd.f32 %v769, 1e-05
        %v772 = vrsqrt.pop %v770
        %v773 = vrsqrt.pop %v771
        %v774 = vmul.f32 %v758, %v772
        %v775 = vmul.f32 %v759, %v773
        %v777 = vlaneseq
        %v778 = vshrl.u32 %v777, 7
        %v779 = vsub.s32 0, %v778
        %v780 = vrot.slane %v746, %v779
        %v782 = vmul.f32 %v774, %v780
        %v783 = vmul.f32 %v775, %v780
        %v785 = vlaneseq
        %v786 = vshrl.u32 %v785, 7
        %v787 = vsub.s32 0, %v786
        %v788 = vrot.slane %v747, %v787
        %v790 = vadd.f32 %v782, %v788
        %v791 = vadd.f32 %v783, %v788
        %v792 = vpack.c.bf16 %v791, %v790
        %v793 = vld [vmem:[%s700] sm:$0xf]
        %v794 = vld [vmem:[%s700 + $0x4] sm:$0xf]
        %v795 = vld [vmem:[%s700 + $0x8] sm:$0xf]
        %v796 = vld [vmem:[%s700 + $0xc] sm:$0xf]
        %v797 = vld [vmem:[%s703] sm:$0x1]
        %v799 = vlaneseq
        %v800 = vshrl.u32 %v799, 7
        %v801 = vsub.s32 0, %v800
        %v802 = vrot.slane %v797, %v801
        %v808 = vunpack.c.l.b16 %v793
        %v809 = vunpack.c.l.b16 %v794
        %v810 = vunpack.c.l.b16 %v795
        %v811 = vunpack.c.l.b16 %v796
        %v812 = vpack.c.b16 %v809, %v808
        %v813 = vpack.c.b16 %v811, %v810
        %v817 = vsel %vm748, %v792, 0
        %819 = vmatprep.subr.bf16.mxu0 0
        %820 = vmatpush1.bf16.msra.mxu0 %v812
        %821 = vmatprep.subr.bf16.mxu0 0
        %822 = vmatpush1.bf16.msra.mxu0 %v813
        %823 = vmatprep.subr.bf16.mxu0 0
        %824 = vmatpush1.bf16.msra.mxu0 0
        %825 = vmatprep.subr.bf16.mxu0 0
        %826 = vmatpush1.bf16.msra.mxu0 0
        %827 = vmatprep.subr.bf16.mxu0 0
        %828 = vmatpush1.bf16.msra.mxu0 0
        %829 = vmatprep.subr.bf16.mxu0 0
        %830 = vmatpush1.bf16.msra.mxu0 0
        %831 = vmatprep.subr.bf16.mxu0 0
        %832 = vmatpush1.bf16.msra.mxu0 0
        %833 = vmatprep.subr.bf16.mxu0 0
        %834 = vmatpush1.bf16.msra.mxu0 0
        %835 = vmatprep.subr.bf16.mxu0 0
        %836 = vmatpush1.bf16.msra.mxu0 0
        %837 = vmatprep.subr.bf16.mxu0 0
        %838 = vmatpush1.bf16.msra.mxu0 0
        %839 = vmatprep.subr.bf16.mxu0 0
        %840 = vmatpush1.bf16.msra.mxu0 0
        %841 = vmatprep.subr.bf16.mxu0 0
        %842 = vmatpush1.bf16.msra.mxu0 0
        %843 = vmatprep.subr.bf16.mxu0 0
        %844 = vmatpush1.bf16.msra.mxu0 0
        %845 = vmatprep.subr.bf16.mxu0 0
        %846 = vmatpush1.bf16.msra.mxu0 0
        %847 = vmatprep.subr.bf16.mxu0 0
        %848 = vmatpush1.bf16.msra.mxu0 0
        %849 = vmatprep.subr.bf16.mxu0 0
        %850 = vmatpush1.bf16.msra.mxu0 0
        %851 = vmatprep.mubr.bf16.mxu0 0
        %852 = vmatmul.mubr.bf16.gmra.mrb[0].mxu0 %v817
        %v853 = vpop.f32.mrb[0].mxu0
        %v854 = vadd.f32 %v802, %v853
        %v855 = vpop.f32.mrb[0].mxu0
        %v856 = vpop.f32.mrb[0].mxu0
        %v857 = vadd.f32 %v802, %v856
        %v858 = vpop.f32.mrb[0].mxu0
        %859 = vdwg.mxu0
        %v860 = vmul.f32 %v854, 0.35355338
        %v861 = vmul.f32 %v857, 0.35355338
        %v862 = vld [vmem:[%s17] sm:$0xff]
        %v863 = vpack.c.bf16 %v860, %v860
        %v864 = vpack.c.bf16 %v861, %v861
        %v865 = vpack.c.bf16 %v854, %v854
        %v866 = vpack.c.bf16 %v857, %v857
        %868 = vrot.lane.b32.xlu0 %v865, 96
        %v869 = vpop.permute.xlu0 %868
        %vm870 = vcmask 64512
        %v872 = vsel %vm870, %v863, 0
        %v875 = vsel %vm870, %v869, 0
        %877 = vmatprep.subr.bf16.mxu0 0
        %878 = vmatpush1.bf16.xpose.msra.mxu0 %v875
        %879 = vmatprep.subr.bf16.mxu0 0
        %880 = vmatpush1.bf16.xpose.msra.mxu0 0
        %881 = vmatprep.subr.bf16.mxu0 0
        %882 = vmatpush1.bf16.xpose.msra.mxu0 0
        %883 = vmatprep.subr.bf16.mxu0 0
        %884 = vmatpush1.bf16.xpose.msra.mxu0 0
        %885 = vmatprep.subr.bf16.mxu0 0
        %886 = vmatpush1.bf16.xpose.msra.mxu0 0
        %887 = vmatprep.subr.bf16.mxu0 0
        %888 = vmatpush1.bf16.xpose.msra.mxu0 0
        %889 = vmatprep.subr.bf16.mxu0 0
        %890 = vmatpush1.bf16.xpose.msra.mxu0 0
        %891 = vmatprep.subr.bf16.mxu0 0
        %892 = vmatpush1.bf16.xpose.msra.mxu0 0
        %893 = vmatprep.subr.bf16.mxu0 0
        %894 = vmatpush1.bf16.xpose.msra.mxu0 0
        %895 = vmatprep.subr.bf16.mxu0 0
        %896 = vmatpush1.bf16.xpose.msra.mxu0 0
        %897 = vmatprep.subr.bf16.mxu0 0
        %898 = vmatpush1.bf16.xpose.msra.mxu0 0
        %899 = vmatprep.subr.bf16.mxu0 0
        %900 = vmatpush1.bf16.xpose.msra.mxu0 0
        %901 = vmatprep.subr.bf16.mxu0 0
        %902 = vmatpush1.bf16.xpose.msra.mxu0 0
        %903 = vmatprep.subr.bf16.mxu0 0
        %904 = vmatpush1.bf16.xpose.msra.mxu0 0
        %905 = vmatprep.subr.bf16.mxu0 0
        %906 = vmatpush1.bf16.xpose.msra.mxu0 0
        %907 = vmatprep.subr.bf16.mxu0 0
        %908 = vmatpush1.bf16.xpose.msra.mxu0 0
        %909 = vmatprep.mubr.bf16.mxu0 0
        %910 = vmatmul.mubr.bf16.gmra.mrb[0].mxu0 %v872
        %v911 = vpop.f32.mrb[0].mxu0
        %v912 = vadd.f32 %v862, %v911
        %v913 = vpop.f32.mrb[0].mxu0
        %v914 = vpop.f32.mrb[0].mxu0
        %v915 = vpop.f32.mrb[0].mxu0
        %916 = vdwg.mxu0
        %918 = vrot.lane.b32.xlu0 %v866, 96
        %v919 = vpop.permute.xlu0 %918
        %v921 = vsel %vm870, %v864, 0
        %v924 = vsel %vm870, %v919, 0
        %926 = vmatprep.subr.bf16.mxu0 0
        %927 = vmatpush1.bf16.xpose.msra.mxu0 %v924
        %928 = vmatprep.subr.bf16.mxu0 0
        %929 = vmatpush1.bf16.xpose.msra.mxu0 0
        %930 = vmatprep.subr.bf16.mxu0 0
        %931 = vmatpush1.bf16.xpose.msra.mxu0 0
        %932 = vmatprep.subr.bf16.mxu0 0
        %933 = vmatpush1.bf16.xpose.msra.mxu0 0
        %934 = vmatprep.subr.bf16.mxu0 0
        %935 = vmatpush1.bf16.xpose.msra.mxu0 0
        %936 = vmatprep.subr.bf16.mxu0 0
        %937 = vmatpush1.bf16.xpose.msra.mxu0 0
        %938 = vmatprep.subr.bf16.mxu0 0
        %939 = vmatpush1.bf16.xpose.msra.mxu0 0
        %940 = vmatprep.subr.bf16.mxu0 0
        %941 = vmatpush1.bf16.xpose.msra.mxu0 0
        %942 = vmatprep.subr.bf16.mxu0 0
        %943 = vmatpush1.bf16.xpose.msra.mxu0 0
        %944 = vmatprep.subr.bf16.mxu0 0
        %945 = vmatpush1.bf16.xpose.msra.mxu0 0
        %946 = vmatprep.subr.bf16.mxu0 0
        %947 = vmatpush1.bf16.xpose.msra.mxu0 0
        %948 = vmatprep.subr.bf16.mxu0 0
        %949 = vmatpush1.bf16.xpose.msra.mxu0 0
        %950 = vmatprep.subr.bf16.mxu0 0
        %951 = vmatpush1.bf16.xpose.msra.mxu0 0
        %952 = vmatprep.subr.bf16.mxu0 0
        %953 = vmatpush1.bf16.xpose.msra.mxu0 0
        %954 = vmatprep.subr.bf16.mxu0 0
        %955 = vmatpush1.bf16.xpose.msra.mxu0 0
        %956 = vmatprep.subr.bf16.mxu0 0
        %957 = vmatpush1.bf16.xpose.msra.mxu0 0
        %958 = vmatprep.mubr.bf16.mxu0 0
        %959 = vmatmul.mubr.bf16.gmra.mrb[0].mxu0 %v921
        %v960 = vpop.f32.mrb[0].mxu0
        %v961 = vadd.f32 %v862, %v960
        %v962 = vpop.f32.mrb[0].mxu0
        %v963 = vpop.f32.mrb[0].mxu0
        %v964 = vpop.f32.mrb[0].mxu0
        %965 = vdwg.mxu0
        %v966 = vsel %vm870, %v912, -inf
        %967 = vmax.xlane.f32.xlu0 %v966
        %v968 = vpop.xlane.xlu0 %967
        %v969 = vsel %vm870, %v961, -inf
        %970 = vmax.xlane.f32.xlu0 %v969
        %v971 = vpop.xlane.xlu0 %970
        %v972 = vsub.f32 %v912, %v968
        %v973 = vsub.f32 %v961, %v971
        %v974 = vmul.f32 %v972, 1.442695
        %v975 = vpow.pop %v974
        %v976 = vmul.f32 %v973, 1.442695
        %v977 = vpow.pop %v976
        %v978 = vsel %vm870, %v975, 0.0
        %979 = vadd.xlane.f32.xlu0 %v978
        %v980 = vpop.xlane.xlu0 %979
        %v981 = vsel %vm870, %v977, 0.0
        %982 = vadd.xlane.f32.xlu0 %v981
        %v983 = vpop.xlane.xlu0 %982
        %v984 = vrcp.pop %v980
        %v985 = vrcp.pop %v983
        %v986 = vmul.f32 %v975, %v984
        %v987 = vmul.f32 %v977, %v985
        %v988 = vpack.c.bf16 %v986, %v986
        %v989 = vpack.c.bf16 %v987, %v987
        %990 = vrot.lane.b32.xlu0 %v865, 64
        %v991 = vpop.permute.xlu0 %990
        %v993 = vsel %vm870, %v988, 0
        %vm995 = vcmask 1043456
        %v997 = vsel %vm995, %v991, 0
        %999 = vmatprep.subr.bf16.mxu0 0
        %1000 = vmatpush1.bf16.msra.mxu0 %v997
        %1001 = vmatprep.subr.bf16.mxu0 0
        %1002 = vmatpush1.bf16.msra.mxu0 0
        %1003 = vmatprep.subr.bf16.mxu0 0
        %1004 = vmatpush1.bf16.msra.mxu0 0
        %1005 = vmatprep.subr.bf16.mxu0 0
        %1006 = vmatpush1.bf16.msra.mxu0 0
        %1007 = vmatprep.subr.bf16.mxu0 0
        %1008 = vmatpush1.bf16.msra.mxu0 0
        %1009 = vmatprep.subr.bf16.mxu0 0
        %1010 = vmatpush1.bf16.msra.mxu0 0
        %1011 = vmatprep.subr.bf16.mxu0 0
        %1012 = vmatpush1.bf16.msra.mxu0 0
        %1013 = vmatprep.subr.bf16.mxu0 0
        %1014 = vmatpush1.bf16.msra.mxu0 0
        %1015 = vmatprep.subr.bf16.mxu0 0
        %1016 = vmatpush1.bf16.msra.mxu0 0
        %1017 = vmatprep.subr.bf16.mxu0 0
        %1018 = vmatpush1.bf16.msra.mxu0 0
        %1019 = vmatprep.subr.bf16.mxu0 0
        %1020 = vmatpush1.bf16.msra.mxu0 0
        %1021 = vmatprep.subr.bf16.mxu0 0
        %1022 = vmatpush1.bf16.msra.mxu0 0
        %1023 = vmatprep.subr.bf16.mxu0 0
        %1024 = vmatpush1.bf16.msra.mxu0 0
        %1025 = vmatprep.subr.bf16.mxu0 0
        %1026 = vmatpush1.bf16.msra.mxu0 0
        %1027 = vmatprep.subr.bf16.mxu0 0
        %1028 = vmatpush1.bf16.msra.mxu0 0
        %1029 = vmatprep.subr.bf16.mxu0 0
        %1030 = vmatpush1.bf16.msra.mxu0 0
        %1031 = vmatprep.mubr.bf16.mxu0 0
        %1032 = vmatmul.mubr.bf16.gmra.mrb[0].mxu0 %v993
        %v1033 = vpop.f32.mrb[0].mxu0
        %v1034 = vadd.f32 0.0, %v1033
        %v1035 = vpop.f32.mrb[0].mxu0
        %v1036 = vpop.f32.mrb[0].mxu0
        %v1037 = vpop.f32.mrb[0].mxu0
        %1038 = vdwg.mxu0
        %1039 = vrot.lane.b32.xlu0 %v866, 64
        %v1040 = vpop.permute.xlu0 %1039
        %v1042 = vsel %vm870, %v989, 0
        %v1045 = vsel %vm995, %v1040, 0
        %1047 = vmatprep.subr.bf16.mxu0 0
        %1048 = vmatpush1.bf16.msra.mxu0 %v1045
        %1049 = vmatprep.subr.bf16.mxu0 0
        %1050 = vmatpush1.bf16.msra.mxu0 0
        %1051 = vmatprep.subr.bf16.mxu0 0
        %1052 = vmatpush1.bf16.msra.mxu0 0
        %1053 = vmatprep.subr.bf16.mxu0 0
        %1054 = vmatpush1.bf16.msra.mxu0 0
        %1055 = vmatprep.subr.bf16.mxu0 0
        %1056 = vmatpush1.bf16.msra.mxu0 0
        %1057 = vmatprep.subr.bf16.mxu0 0
        %1058 = vmatpush1.bf16.msra.mxu0 0
        %1059 = vmatprep.subr.bf16.mxu0 0
        %1060 = vmatpush1.bf16.msra.mxu0 0
        %1061 = vmatprep.subr.bf16.mxu0 0
        %1062 = vmatpush1.bf16.msra.mxu0 0
        %1063 = vmatprep.subr.bf16.mxu0 0
        %1064 = vmatpush1.bf16.msra.mxu0 0
        %1065 = vmatprep.subr.bf16.mxu0 0
        %1066 = vmatpush1.bf16.msra.mxu0 0
        %1067 = vmatprep.subr.bf16.mxu0 0
        %1068 = vmatpush1.bf16.msra.mxu0 0
        %1069 = vmatprep.subr.bf16.mxu0 0
        %1070 = vmatpush1.bf16.msra.mxu0 0
        %1071 = vmatprep.subr.bf16.mxu0 0
        %1072 = vmatpush1.bf16.msra.mxu0 0
        %1073 = vmatprep.subr.bf16.mxu0 0
        %1074 = vmatpush1.bf16.msra.mxu0 0
        %1075 = vmatprep.subr.bf16.mxu0 0
        %1076 = vmatpush1.bf16.msra.mxu0 0
        %1077 = vmatprep.subr.bf16.mxu0 0
        %1078 = vmatpush1.bf16.msra.mxu0 0
        %1079 = vmatprep.mubr.bf16.mxu0 0
        %1080 = vmatmul.mubr.bf16.gmra.mrb[0].mxu0 %v1042
        %v1081 = vpop.f32.mrb[0].mxu0
        %v1082 = vadd.f32 0.0, %v1081
        %v1083 = vpop.f32.mrb[0].mxu0
        %v1084 = vpop.f32.mrb[0].mxu0
        %v1085 = vpop.f32.mrb[0].mxu0
        %1086 = vdwg.mxu0
        %v1087 = vpack.c.bf16 %v1082, %v1034
        %v1088 = vld [vmem:[%s708] sm:$0xf]
        %1090 = vrot.lane.b32.xlu0 %v863, 120
        %v1091 = vpop.permute.xlu0 %1090
        %1092 = vrot.lane.b32.xlu0 %v865, 88
        %v1093 = vpop.permute.xlu0 %1092
        %v1095 = vsel %vm870, %v1091, 0
        %v1098 = vsel %vm870, %v1093, 0
        %1100 = vmatprep.subr.bf16.mxu0 0
        %1101 = vmatpush1.bf16.xpose.msra.mxu0 %v1098
        %1102 = vmatprep.subr.bf16.mxu0 0
        %1103 = vmatpush1.bf16.xpose.msra.mxu0 0
        %1104 = vmatprep.subr.bf16.mxu0 0
        %1105 = vmatpush1.bf16.xpose.msra.mxu0 0
        %1106 = vmatprep.subr.bf16.mxu0 0
        %1107 = vmatpush1.bf16.xpose.msra.mxu0 0
        %1108 = vmatprep.subr.bf16.mxu0 0
        %1109 = vmatpush1.bf16.xpose.msra.mxu0 0
        %1110 = vmatprep.subr.bf16.mxu0 0
        %1111 = vmatpush1.bf16.xpose.msra.mxu0 0
        %1112 = vmatprep.subr.bf16.mxu0 0
        %1113 = vmatpush1.bf16.xpose.msra.mxu0 0
        %1114 = vmatprep.subr.bf16.mxu0 0
        %1115 = vmatpush1.bf16.xpose.msra.mxu0 0
        %1116 = vmatprep.subr.bf16.mxu0 0
        %1117 = vmatpush1.bf16.xpose.msra.mxu0 0
        %1118 = vmatprep.subr.bf16.mxu0 0
        %1119 = vmatpush1.bf16.xpose.msra.mxu0 0
        %1120 = vmatprep.subr.bf16.mxu0 0
        %1121 = vmatpush1.bf16.xpose.msra.mxu0 0
        %1122 = vmatprep.subr.bf16.mxu0 0
        %1123 = vmatpush1.bf16.xpose.msra.mxu0 0
        %1124 = vmatprep.subr.bf16.mxu0 0
        %1125 = vmatpush1.bf16.xpose.msra.mxu0 0
        %1126 = vmatprep.subr.bf16.mxu0 0
        %1127 = vmatpush1.bf16.xpose.msra.mxu0 0
        %1128 = vmatprep.subr.bf16.mxu0 0
        %1129 = vmatpush1.bf16.xpose.msra.mxu0 0
        %1130 = vmatprep.subr.bf16.mxu0 0
        %1131 = vmatpush1.bf16.xpose.msra.mxu0 0
        %1132 = vmatprep.mubr.bf16.mxu0 0
        %1133 = vmatmul.mubr.bf16.gmra.mrb[0].mxu0 %v1095
        %v1134 = vpop.f32.mrb[0].mxu0
        %v1135 = vadd.f32 %v862, %v1134
        %v1136 = vpop.f32.mrb[0].mxu0
        %v1137 = vpop.f32.mrb[0].mxu0
        %v1138 = vpop.f32.mrb[0].mxu0
        %1139 = vdwg.mxu0
        %1141 = vrot.lane.b32.xlu0 %v864, 120
        %v1142 = vpop.permute.xlu0 %1141
        %1143 = vrot.lane.b32.xlu0 %v866, 88
        %v1144 = vpop.permute.xlu0 %1143
        %v1146 = vsel %vm870, %v1142, 0
        %v1149 = vsel %vm870, %v1144, 0
        %1151 = vmatprep.subr.bf16.mxu0 0
        %1152 = vmatpush1.bf16.xpose.msra.mxu0 %v1149
        %1153 = vmatprep.subr.bf16.mxu0 0
        %1154 = vmatpush1.bf16.xpose.msra.mxu0 0
        %1155 = vmatprep.subr.bf16.mxu0 0
        %1156 = vmatpush1.bf16.xpose.msra.mxu0 0
        %1157 = vmatprep.subr.bf16.mxu0 0
        %1158 = vmatpush1.bf16.xpose.msra.mxu0 0
        %1159 = vmatprep.subr.bf16.mxu0 0
        %1160 = vmatpush1.bf16.xpose.msra.mxu0 0
        %1161 = vmatprep.subr.bf16.mxu0 0
        %1162 = vmatpush1.bf16.xpose.msra.mxu0 0
        %1163 = vmatprep.subr.bf16.mxu0 0
        %1164 = vmatpush1.bf16.xpose.msra.mxu0 0
        %1165 = vmatprep.subr.bf16.mxu0 0
        %1166 = vmatpush1.bf16.xpose.msra.mxu0 0
        %1167 = vmatprep.subr.bf16.mxu0 0
        %1168 = vmatpush1.bf16.xpose.msra.mxu0 0
        %1169 = vmatprep.subr.bf16.mxu0 0
        %1170 = vmatpush1.bf16.xpose.msra.mxu0 0
        %1171 = vmatprep.subr.bf16.mxu0 0
        %1172 = vmatpush1.bf16.xpose.msra.mxu0 0
        %1173 = vmatprep.subr.bf16.mxu0 0
        %1174 = vmatpush1.bf16.xpose.msra.mxu0 0
        %1175 = vmatprep.subr.bf16.mxu0 0
        %1176 = vmatpush1.bf16.xpose.msra.mxu0 0
        %1177 = vmatprep.subr.bf16.mxu0 0
        %1178 = vmatpush1.bf16.xpose.msra.mxu0 0
        %1179 = vmatprep.subr.bf16.mxu0 0
        %1180 = vmatpush1.bf16.xpose.msra.mxu0 0
        %1181 = vmatprep.subr.bf16.mxu0 0
        %1182 = vmatpush1.bf16.xpose.msra.mxu0 0
        %1183 = vmatprep.mubr.bf16.mxu0 0
        %1184 = vmatmul.mubr.bf16.gmra.mrb[0].mxu0 %v1146
        %v1185 = vpop.f32.mrb[0].mxu0
        %v1186 = vadd.f32 %v862, %v1185
        %v1187 = vpop.f32.mrb[0].mxu0
        %v1188 = vpop.f32.mrb[0].mxu0
        %v1189 = vpop.f32.mrb[0].mxu0
        %1190 = vdwg.mxu0
        %v1191 = vsel %vm870, %v1135, -inf
        %1192 = vmax.xlane.f32.xlu0 %v1191
        %v1193 = vpop.xlane.xlu0 %1192
        %v1194 = vsel %vm870, %v1186, -inf
        %1195 = vmax.xlane.f32.xlu0 %v1194
        %v1196 = vpop.xlane.xlu0 %1195
        %v1197 = vsub.f32 %v1135, %v1193
        %v1198 = vsub.f32 %v1186, %v1196
        %v1199 = vmul.f32 %v1197, 1.442695
        %v1200 = vpow.pop %v1199
        %v1201 = vmul.f32 %v1198, 1.442695
        %v1202 = vpow.pop %v1201
        %v1203 = vsel %vm870, %v1200, 0.0
        %1204 = vadd.xlane.f32.xlu0 %v1203
        %v1205 = vpop.xlane.xlu0 %1204
        %v1206 = vsel %vm870, %v1202, 0.0
        %1207 = vadd.xlane.f32.xlu0 %v1206
        %v1208 = vpop.xlane.xlu0 %1207
        %v1209 = vrcp.pop %v1205
        %v1210 = vrcp.pop %v1208
        %v1211 = vmul.f32 %v1200, %v1209
        %v1212 = vmul.f32 %v1202, %v1210
        %v1213 = vpack.c.bf16 %v1211, %v1211
        %v1214 = vpack.c.bf16 %v1212, %v1212
        %1215 = vrot.lane.b32.xlu0 %v865, 56
        %v1216 = vpop.permute.xlu0 %1215
        %v1218 = vsel %vm870, %v1213, 0
        %v1221 = vsel %vm995, %v1216, 0
        %1223 = vmatprep.subr.bf16.mxu0 0
        %1224 = vmatpush1.bf16.msra.mxu0 %v1221
        %1225 = vmatprep.subr.bf16.mxu0 0
        %1226 = vmatpush1.bf16.msra.mxu0 0
        %1227 = vmatprep.subr.bf16.mxu0 0
        %1228 = vmatpush1.bf16.msra.mxu0 0
        %1229 = vmatprep.subr.bf16.mxu0 0
        %1230 = vmatpush1.bf16.msra.mxu0 0
        %1231 = vmatprep.subr.bf16.mxu0 0
        %1232 = vmatpush1.bf16.msra.mxu0 0
        %1233 = vmatprep.subr.bf16.mxu0 0
        %1234 = vmatpush1.bf16.msra.mxu0 0
        %1235 = vmatprep.subr.bf16.mxu0 0
        %1236 = vmatpush1.bf16.msra.mxu0 0
        %1237 = vmatprep.subr.bf16.mxu0 0
        %1238 = vmatpush1.bf16.msra.mxu0 0
        %1239 = vmatprep.subr.bf16.mxu0 0
        %1240 = vmatpush1.bf16.msra.mxu0 0
        %1241 = vmatprep.subr.bf16.mxu0 0
        %1242 = vmatpush1.bf16.msra.mxu0 0
        %1243 = vmatprep.subr.bf16.mxu0 0
        %1244 = vmatpush1.bf16.msra.mxu0 0
        %1245 = vmatprep.subr.bf16.mxu0 0
        %1246 = vmatpush1.bf16.msra.mxu0 0
        %1247 = vmatprep.subr.bf16.mxu0 0
        %1248 = vmatpush1.bf16.msra.mxu0 0
        %1249 = vmatprep.subr.bf16.mxu0 0
        %1250 = vmatpush1.bf16.msra.mxu0 0
        %1251 = vmatprep.subr.bf16.mxu0 0
        %1252 = vmatpush1.bf16.msra.mxu0 0
        %1253 = vmatprep.subr.bf16.mxu0 0
        %1254 = vmatpush1.bf16.msra.mxu0 0
        %1255 = vmatprep.mubr.bf16.mxu0 0
        %1256 = vmatmul.mubr.bf16.gmra.mrb[0].mxu0 %v1218
        %v1257 = vpop.f32.mrb[0].mxu0
        %v1258 = vadd.f32 0.0, %v1257
        %v1259 = vpop.f32.mrb[0].mxu0
        %v1260 = vpop.f32.mrb[0].mxu0
        %v1261 = vpop.f32.mrb[0].mxu0
        %1262 = vdwg.mxu0
        %1263 = vrot.lane.b32.xlu0 %v866, 56
        %v1264 = vpop.permute.xlu0 %1263
        %v1266 = vsel %vm870, %v1214, 0
        %v1269 = vsel %vm995, %v1264, 0
        %1271 = vmatprep.subr.bf16.mxu0 0
        %1272 = vmatpush1.bf16.msra.mxu0 %v1269
        %1273 = vmatprep.subr.bf16.mxu0 0
        %1274 = vmatpush1.bf16.msra.mxu0 0
        %1275 = vmatprep.subr.bf16.mxu0 0
        %1276 = vmatpush1.bf16.msra.mxu0 0
        %1277 = vmatprep.subr.bf16.mxu0 0
        %1278 = vmatpush1.bf16.msra.mxu0 0
        %1279 = vmatprep.subr.bf16.mxu0 0
        %1280 = vmatpush1.bf16.msra.mxu0 0
        %1281 = vmatprep.subr.bf16.mxu0 0
        %1282 = vmatpush1.bf16.msra.mxu0 0
        %1283 = vmatprep.subr.bf16.mxu0 0
        %1284 = vmatpush1.bf16.msra.mxu0 0
        %1285 = vmatprep.subr.bf16.mxu0 0
        %1286 = vmatpush1.bf16.msra.mxu0 0
        %1287 = vmatprep.subr.bf16.mxu0 0
        %1288 = vmatpush1.bf16.msra.mxu0 0
        %1289 = vmatprep.subr.bf16.mxu0 0
        %1290 = vmatpush1.bf16.msra.mxu0 0
        %1291 = vmatprep.subr.bf16.mxu0 0
        %1292 = vmatpush1.bf16.msra.mxu0 0
        %1293 = vmatprep.subr.bf16.mxu0 0
        %1294 = vmatpush1.bf16.msra.mxu0 0
        %1295 = vmatprep.subr.bf16.mxu0 0
        %1296 = vmatpush1.bf16.msra.mxu0 0
        %1297 = vmatprep.subr.bf16.mxu0 0
        %1298 = vmatpush1.bf16.msra.mxu0 0
        %1299 = vmatprep.subr.bf16.mxu0 0
        %1300 = vmatpush1.bf16.msra.mxu0 0
        %1301 = vmatprep.subr.bf16.mxu0 0
        %1302 = vmatpush1.bf16.msra.mxu0 0
        %1303 = vmatprep.mubr.bf16.mxu0 0
        %1304 = vmatmul.mubr.bf16.gmra.mrb[0].mxu0 %v1266
        %v1305 = vpop.f32.mrb[0].mxu0
        %v1306 = vadd.f32 0.0, %v1305
        %v1307 = vpop.f32.mrb[0].mxu0
        %v1308 = vpop.f32.mrb[0].mxu0
        %v1309 = vpop.f32.mrb[0].mxu0
        %1310 = vdwg.mxu0
        %v1311 = vpack.c.bf16 %v1306, %v1258
        %s1312 = scalar_lea.vmem %s708, 4
        %v1313 = vld [vmem:[%s1312] sm:$0xf]
        %v1315 = vsel %vm870, %v1311, 0
        %v1318 = vsel %vm995, %v1313, 0
        %1320 = vmatprep.subr.bf16.mxu0 0
        %1321 = vmatpush1.bf16.msra.mxu0 %v1318
        %1322 = vmatprep.subr.bf16.mxu0 0
        %1323 = vmatpush1.bf16.msra.mxu0 0
        %1324 = vmatprep.subr.bf16.mxu0 0
        %1325 = vmatpush1.bf16.msra.mxu0 0
        %1326 = vmatprep.subr.bf16.mxu0 0
        %1327 = vmatpush1.bf16.msra.mxu0 0
        %1328 = vmatprep.subr.bf16.mxu0 0
        %1329 = vmatpush1.bf16.msra.mxu0 0
        %1330 = vmatprep.subr.bf16.mxu0 0
        %1331 = vmatpush1.bf16.msra.mxu0 0
        %1332 = vmatprep.subr.bf16.mxu0 0
        %1333 = vmatpush1.bf16.msra.mxu0 0
        %1334 = vmatprep.subr.bf16.mxu0 0
        %1335 = vmatpush1.bf16.msra.mxu0 0
        %1336 = vmatprep.subr.bf16.mxu0 0
        %1337 = vmatpush1.bf16.msra.mxu0 0
        %1338 = vmatprep.subr.bf16.mxu0 0
        %1339 = vmatpush1.bf16.msra.mxu0 0
        %1340 = vmatprep.subr.bf16.mxu0 0
        %1341 = vmatpush1.bf16.msra.mxu0 0
        %1342 = vmatprep.subr.bf16.mxu0 0
        %1343 = vmatpush1.bf16.msra.mxu0 0
        %1344 = vmatprep.subr.bf16.mxu0 0
        %1345 = vmatpush1.bf16.msra.mxu0 0
        %1346 = vmatprep.subr.bf16.mxu0 0
        %1347 = vmatpush1.bf16.msra.mxu0 0
        %1348 = vmatprep.subr.bf16.mxu0 0
        %1349 = vmatpush1.bf16.msra.mxu0 0
        %1350 = vmatprep.subr.bf16.mxu0 0
        %1351 = vmatpush1.bf16.msra.mxu0 0
        %1352 = vmatprep.mubr.bf16.mxu0 0
        %1353 = vmatmul.mubr.bf16.gmra.mrb[0].mxu0 %v1315
        %v1354 = vpop.f32.mrb[0].mxu0
        %v1355 = vadd.f32 0.0, %v1354
        %v1356 = vpop.f32.mrb[0].mxu0
        %v1357 = vpop.f32.mrb[0].mxu0
        %v1358 = vadd.f32 0.0, %v1357
        %v1359 = vpop.f32.mrb[0].mxu0
        %1360 = vdwg.mxu0
        %v1362 = vsel %vm870, %v1087, 0
        %v1365 = vsel %vm995, %v1088, 0
        %1367 = vmatprep.subr.bf16.mxu0 0
        %1368 = vmatpush1.bf16.msra.mxu0 %v1365
        %1369 = vmatprep.subr.bf16.mxu0 0
        %1370 = vmatpush1.bf16.msra.mxu0 0
        %1371 = vmatprep.subr.bf16.mxu0 0
        %1372 = vmatpush1.bf16.msra.mxu0 0
        %1373 = vmatprep.subr.bf16.mxu0 0
        %1374 = vmatpush1.bf16.msra.mxu0 0
        %1375 = vmatprep.subr.bf16.mxu0 0
        %1376 = vmatpush1.bf16.msra.mxu0 0
        %1377 = vmatprep.subr.bf16.mxu0 0
        %1378 = vmatpush1.bf16.msra.mxu0 0
        %1379 = vmatprep.subr.bf16.mxu0 0
        %1380 = vmatpush1.bf16.msra.mxu0 0
        %1381 = vmatprep.subr.bf16.mxu0 0
        %1382 = vmatpush1.bf16.msra.mxu0 0
        %1383 = vmatprep.subr.bf16.mxu0 0
        %1384 = vmatpush1.bf16.msra.mxu0 0
        %1385 = vmatprep.subr.bf16.mxu0 0
        %1386 = vmatpush1.bf16.msra.mxu0 0
        %1387 = vmatprep.subr.bf16.mxu0 0
        %1388 = vmatpush1.bf16.msra.mxu0 0
        %1389 = vmatprep.subr.bf16.mxu0 0
        %1390 = vmatpush1.bf16.msra.mxu0 0
        %1391 = vmatprep.subr.bf16.mxu0 0
        %1392 = vmatpush1.bf16.msra.mxu0 0
        %1393 = vmatprep.subr.bf16.mxu0 0
        %1394 = vmatpush1.bf16.msra.mxu0 0
        %1395 = vmatprep.subr.bf16.mxu0 0
        %1396 = vmatpush1.bf16.msra.mxu0 0
        %1397 = vmatprep.subr.bf16.mxu0 0
        %1398 = vmatpush1.bf16.msra.mxu0 0
        %1399 = vmatprep.mubr.bf16.mxu0 0
        %1400 = vmatmul.mubr.bf16.gmra.mrb[0].mxu0 %v1362
        %v1401 = vpop.f32.mrb[0].mxu0
        %v1402 = vadd.f32 %v1355, %v1401
        %v1403 = vpop.f32.mrb[0].mxu0
        %v1404 = vpop.f32.mrb[0].mxu0
        %v1405 = vadd.f32 %v1358, %v1404
        %v1406 = vpop.f32.mrb[0].mxu0
        %1407 = vdwg.mxu0
        %1408 = vrot.lane.b32.xlu0 %v863, 112
        %v1409 = vpop.permute.xlu0 %1408
        %1410 = vrot.lane.b32.xlu0 %v865, 80
        %v1411 = vpop.permute.xlu0 %1410
        %v1413 = vsel %vm870, %v1409, 0
        %v1416 = vsel %vm870, %v1411, 0
        %1418 = vmatprep.subr.bf16.mxu0 0
        %1419 = vmatpush1.bf16.xpose.msra.mxu0 %v1416
        %1420 = vmatprep.subr.bf16.mxu0 0
        %1421 = vmatpush1.bf16.xpose.msra.mxu0 0
        %1422 = vmatprep.subr.bf16.mxu0 0
        %1423 = vmatpush1.bf16.xpose.msra.mxu0 0
        %1424 = vmatprep.subr.bf16.mxu0 0
        %1425 = vmatpush1.bf16.xpose.msra.mxu0 0
        %1426 = vmatprep.subr.bf16.mxu0 0
        %1427 = vmatpush1.bf16.xpose.msra.mxu0 0
        %1428 = vmatprep.subr.bf16.mxu0 0
        %1429 = vmatpush1.bf16.xpose.msra.mxu0 0
        %1430 = vmatprep.subr.bf16.mxu0 0
        %1431 = vmatpush1.bf16.xpose.msra.mxu0 0
        %1432 = vmatprep.subr.bf16.mxu0 0
        %1433 = vmatpush1.bf16.xpose.msra.mxu0 0
        %1434 = vmatprep.subr.bf16.mxu0 0
        %1435 = vmatpush1.bf16.xpose.msra.mxu0 0
        %1436 = vmatprep.subr.bf16.mxu0 0
        %1437 = vmatpush1.bf16.xpose.msra.mxu0 0
        %1438 = vmatprep.subr.bf16.mxu0 0
        %1439 = vmatpush1.bf16.xpose.msra.mxu0 0
        %1440 = vmatprep.subr.bf16.mxu0 0
        %1441 = vmatpush1.bf16.xpose.msra.mxu0 0
        %1442 = vmatprep.subr.bf16.mxu0 0
        %1443 = vmatpush1.bf16.xpose.msra.mxu0 0
        %1444 = vmatprep.subr.bf16.mxu0 0
        %1445 = vmatpush1.bf16.xpose.msra.mxu0 0
        %1446 = vmatprep.subr.bf16.mxu0 0
        %1447 = vmatpush1.bf16.xpose.msra.mxu0 0
        %1448 = vmatprep.subr.bf16.mxu0 0
        %1449 = vmatpush1.bf16.xpose.msra.mxu0 0
        %1450 = vmatprep.mubr.bf16.mxu0 0
        %1451 = vmatmul.mubr.bf16.gmra.mrb[0].mxu0 %v1413
        %v1452 = vpop.f32.mrb[0].mxu0
        %v1453 = vadd.f32 %v862, %v1452
        %v1454 = vpop.f32.mrb[0].mxu0
        %v1455 = vpop.f32.mrb[0].mxu0
        %v1456 = vpop.f32.mrb[0].mxu0
        %1457 = vdwg.mxu0
        %1458 = vrot.lane.b32.xlu0 %v864, 112
        %v1459 = vpop.permute.xlu0 %1458
        %1460 = vrot.lane.b32.xlu0 %v866, 80
        %v1461 = vpop.permute.xlu0 %1460
        %v1463 = vsel %vm870, %v1459, 0
        %v1466 = vsel %vm870, %v1461, 0
        %1468 = vmatprep.subr.bf16.mxu0 0
        %1469 = vmatpush1.bf16.xpose.msra.mxu0 %v1466
        %1470 = vmatprep.subr.bf16.mxu0 0
        %1471 = vmatpush1.bf16.xpose.msra.mxu0 0
        %1472 = vmatprep.subr.bf16.mxu0 0
        %1473 = vmatpush1.bf16.xpose.msra.mxu0 0
        %1474 = vmatprep.subr.bf16.mxu0 0
        %1475 = vmatpush1.bf16.xpose.msra.mxu0 0
        %1476 = vmatprep.subr.bf16.mxu0 0
        %1477 = vmatpush1.bf16.xpose.msra.mxu0 0
        %1478 = vmatprep.subr.bf16.mxu0 0
        %1479 = vmatpush1.bf16.xpose.msra.mxu0 0
        %1480 = vmatprep.subr.bf16.mxu0 0
        %1481 = vmatpush1.bf16.xpose.msra.mxu0 0
        %1482 = vmatprep.subr.bf16.mxu0 0
        %1483 = vmatpush1.bf16.xpose.msra.mxu0 0
        %1484 = vmatprep.subr.bf16.mxu0 0
        %1485 = vmatpush1.bf16.xpose.msra.mxu0 0
        %1486 = vmatprep.subr.bf16.mxu0 0
        %1487 = vmatpush1.bf16.xpose.msra.mxu0 0
        %1488 = vmatprep.subr.bf16.mxu0 0
        %1489 = vmatpush1.bf16.xpose.msra.mxu0 0
        %1490 = vmatprep.subr.bf16.mxu0 0
        %1491 = vmatpush1.bf16.xpose.msra.mxu0 0
        %1492 = vmatprep.subr.bf16.mxu0 0
        %1493 = vmatpush1.bf16.xpose.msra.mxu0 0
        %1494 = vmatprep.subr.bf16.mxu0 0
        %1495 = vmatpush1.bf16.xpose.msra.mxu0 0
        %1496 = vmatprep.subr.bf16.mxu0 0
        %1497 = vmatpush1.bf16.xpose.msra.mxu0 0
        %1498 = vmatprep.subr.bf16.mxu0 0
        %1499 = vmatpush1.bf16.xpose.msra.mxu0 0
        %1500 = vmatprep.mubr.bf16.mxu0 0
        %1501 = vmatmul.mubr.bf16.gmra.mrb[0].mxu0 %v1463
        %v1502 = vpop.f32.mrb[0].mxu0
        %v1503 = vadd.f32 %v862, %v1502
        %v1504 = vpop.f32.mrb[0].mxu0
        %v1505 = vpop.f32.mrb[0].mxu0
        %v1506 = vpop.f32.mrb[0].mxu0
        %1507 = vdwg.mxu0
        %v1508 = vsel %vm870, %v1453, -inf
        %1509 = vmax.xlane.f32.xlu0 %v1508
        %v1510 = vpop.xlane.xlu0 %1509
        %v1511 = vsel %vm870, %v1503, -inf
        %1512 = vmax.xlane.f32.xlu0 %v1511
        %v1513 = vpop.xlane.xlu0 %1512
        %v1514 = vsub.f32 %v1453, %v1510
        %v1515 = vsub.f32 %v1503, %v1513
        %v1516 = vmul.f32 %v1514, 1.442695
        %v1517 = vpow.pop %v1516
        %v1518 = vmul.f32 %v1515, 1.442695
        %v1519 = vpow.pop %v1518
        %v1520 = vsel %vm870, %v1517, 0.0
        %1521 = vadd.xlane.f32.xlu0 %v1520
        %v1522 = vpop.xlane.xlu0 %1521
        %v1523 = vsel %vm870, %v1519, 0.0
        %1524 = vadd.xlane.f32.xlu0 %v1523
        %v1525 = vpop.xlane.xlu0 %1524
        %v1526 = vrcp.pop %v1522
        %v1527 = vrcp.pop %v1525
        %v1528 = vmul.f32 %v1517, %v1526
        %v1529 = vmul.f32 %v1519, %v1527
        %v1530 = vpack.c.bf16 %v1528, %v1528
        %v1531 = vpack.c.bf16 %v1529, %v1529
        %1532 = vrot.lane.b32.xlu0 %v865, 48
        %v1533 = vpop.permute.xlu0 %1532
        %v1535 = vsel %vm870, %v1530, 0
        %v1538 = vsel %vm995, %v1533, 0
        %1540 = vmatprep.subr.bf16.mxu0 0
        %1541 = vmatpush1.bf16.msra.mxu0 %v1538
        %1542 = vmatprep.subr.bf16.mxu0 0
        %1543 = vmatpush1.bf16.msra.mxu0 0
        %1544 = vmatprep.subr.bf16.mxu0 0
        %1545 = vmatpush1.bf16.msra.mxu0 0
        %1546 = vmatprep.subr.bf16.mxu0 0
        %1547 = vmatpush1.bf16.msra.mxu0 0
        %1548 = vmatprep.subr.bf16.mxu0 0
        %1549 = vmatpush1.bf16.msra.mxu0 0
        %1550 = vmatprep.subr.bf16.mxu0 0
        %1551 = vmatpush1.bf16.msra.mxu0 0
        %1552 = vmatprep.subr.bf16.mxu0 0
        %1553 = vmatpush1.bf16.msra.mxu0 0
        %1554 = vmatprep.subr.bf16.mxu0 0
        %1555 = vmatpush1.bf16.msra.mxu0 0
        %1556 = vmatprep.subr.bf16.mxu0 0
        %1557 = vmatpush1.bf16.msra.mxu0 0
        %1558 = vmatprep.subr.bf16.mxu0 0
        %1559 = vmatpush1.bf16.msra.mxu0 0
        %1560 = vmatprep.subr.bf16.mxu0 0
        %1561 = vmatpush1.bf16.msra.mxu0 0
        %1562 = vmatprep.subr.bf16.mxu0 0
        %1563 = vmatpush1.bf16.msra.mxu0 0
        %1564 = vmatprep.subr.bf16.mxu0 0
        %1565 = vmatpush1.bf16.msra.mxu0 0
        %1566 = vmatprep.subr.bf16.mxu0 0
        %1567 = vmatpush1.bf16.msra.mxu0 0
        %1568 = vmatprep.subr.bf16.mxu0 0
        %1569 = vmatpush1.bf16.msra.mxu0 0
        %1570 = vmatprep.subr.bf16.mxu0 0
        %1571 = vmatpush1.bf16.msra.mxu0 0
        %1572 = vmatprep.mubr.bf16.mxu0 0
        %1573 = vmatmul.mubr.bf16.gmra.mrb[0].mxu0 %v1535
        %v1574 = vpop.f32.mrb[0].mxu0
        %v1575 = vadd.f32 0.0, %v1574
        %v1576 = vpop.f32.mrb[0].mxu0
        %v1577 = vpop.f32.mrb[0].mxu0
        %v1578 = vpop.f32.mrb[0].mxu0
        %1579 = vdwg.mxu0
        %1580 = vrot.lane.b32.xlu0 %v866, 48
        %v1581 = vpop.permute.xlu0 %1580
        %v1583 = vsel %vm870, %v1531, 0
        %v1586 = vsel %vm995, %v1581, 0
        %1588 = vmatprep.subr.bf16.mxu0 0
        %1589 = vmatpush1.bf16.msra.mxu0 %v1586
        %1590 = vmatprep.subr.bf16.mxu0 0
        %1591 = vmatpush1.bf16.msra.mxu0 0
        %1592 = vmatprep.subr.bf16.mxu0 0
        %1593 = vmatpush1.bf16.msra.mxu0 0
        %1594 = vmatprep.subr.bf16.mxu0 0
        %1595 = vmatpush1.bf16.msra.mxu0 0
        %1596 = vmatprep.subr.bf16.mxu0 0
        %1597 = vmatpush1.bf16.msra.mxu0 0
        %1598 = vmatprep.subr.bf16.mxu0 0
        %1599 = vmatpush1.bf16.msra.mxu0 0
        %1600 = vmatprep.subr.bf16.mxu0 0
        %1601 = vmatpush1.bf16.msra.mxu0 0
        %1602 = vmatprep.subr.bf16.mxu0 0
        %1603 = vmatpush1.bf16.msra.mxu0 0
        %1604 = vmatprep.subr.bf16.mxu0 0
        %1605 = vmatpush1.bf16.msra.mxu0 0
        %1606 = vmatprep.subr.bf16.mxu0 0
        %1607 = vmatpush1.bf16.msra.mxu0 0
        %1608 = vmatprep.subr.bf16.mxu0 0
        %1609 = vmatpush1.bf16.msra.mxu0 0
        %1610 = vmatprep.subr.bf16.mxu0 0
        %1611 = vmatpush1.bf16.msra.mxu0 0
        %1612 = vmatprep.subr.bf16.mxu0 0
        %1613 = vmatpush1.bf16.msra.mxu0 0
        %1614 = vmatprep.subr.bf16.mxu0 0
        %1615 = vmatpush1.bf16.msra.mxu0 0
        %1616 = vmatprep.subr.bf16.mxu0 0
        %1617 = vmatpush1.bf16.msra.mxu0 0
        %1618 = vmatprep.subr.bf16.mxu0 0
        %1619 = vmatpush1.bf16.msra.mxu0 0
        %1620 = vmatprep.mubr.bf16.mxu0 0
        %1621 = vmatmul.mubr.bf16.gmra.mrb[0].mxu0 %v1583
        %v1622 = vpop.f32.mrb[0].mxu0
        %v1623 = vadd.f32 0.0, %v1622
        %v1624 = vpop.f32.mrb[0].mxu0
        %v1625 = vpop.f32.mrb[0].mxu0
        %v1626 = vpop.f32.mrb[0].mxu0
        %1627 = vdwg.mxu0
        %v1628 = vpack.c.bf16 %v1623, %v1575
        %s1629 = scalar_lea.vmem %s708, 8
        %v1630 = vld [vmem:[%s1629] sm:$0xf]
        %v1632 = vsel %vm870, %v1628, 0
        %v1635 = vsel %vm995, %v1630, 0
        %1637 = vmatprep.subr.bf16.mxu0 0
        %1638 = vmatpush1.bf16.msra.mxu0 %v1635
        %1639 = vmatprep.subr.bf16.mxu0 0
        %1640 = vmatpush1.bf16.msra.mxu0 0
        %1641 = vmatprep.subr.bf16.mxu0 0
        %1642 = vmatpush1.bf16.msra.mxu0 0
        %1643 = vmatprep.subr.bf16.mxu0 0
        %1644 = vmatpush1.bf16.msra.mxu0 0
        %1645 = vmatprep.subr.bf16.mxu0 0
        %1646 = vmatpush1.bf16.msra.mxu0 0
        %1647 = vmatprep.subr.bf16.mxu0 0
        %1648 = vmatpush1.bf16.msra.mxu0 0
        %1649 = vmatprep.subr.bf16.mxu0 0
        %1650 = vmatpush1.bf16.msra.mxu0 0
        %1651 = vmatprep.subr.bf16.mxu0 0
        %1652 = vmatpush1.bf16.msra.mxu0 0
        %1653 = vmatprep.subr.bf16.mxu0 0
        %1654 = vmatpush1.bf16.msra.mxu0 0
        %1655 = vmatprep.subr.bf16.mxu0 0
        %1656 = vmatpush1.bf16.msra.mxu0 0
        %1657 = vmatprep.subr.bf16.mxu0 0
        %1658 = vmatpush1.bf16.msra.mxu0 0
        %1659 = vmatprep.subr.bf16.mxu0 0
        %1660 = vmatpush1.bf16.msra.mxu0 0
        %1661 = vmatprep.subr.bf16.mxu0 0
        %1662 = vmatpush1.bf16.msra.mxu0 0
        %1663 = vmatprep.subr.bf16.mxu0 0
        %1664 = vmatpush1.bf16.msra.mxu0 0
        %1665 = vmatprep.subr.bf16.mxu0 0
        %1666 = vmatpush1.bf16.msra.mxu0 0
        %1667 = vmatprep.subr.bf16.mxu0 0
        %1668 = vmatpush1.bf16.msra.mxu0 0
        %1669 = vmatprep.mubr.bf16.mxu0 0
        %1670 = vmatmul.mubr.bf16.gmra.mrb[0].mxu0 %v1632
        %v1671 = vpop.f32.mrb[0].mxu0
        %v1672 = vadd.f32 0.0, %v1671
        %v1673 = vpop.f32.mrb[0].mxu0
        %v1674 = vpop.f32.mrb[0].mxu0
        %v1675 = vadd.f32 0.0, %v1674
        %v1676 = vpop.f32.mrb[0].mxu0
        %1677 = vdwg.mxu0
        %v1678 = vadd.f32 %v1402, %v1672
        %v1679 = vadd.f32 %v1405, %v1675
        %1680 = vrot.lane.b32.xlu0 %v863, 104
        %v1681 = vpop.permute.xlu0 %1680
        %1682 = vrot.lane.b32.xlu0 %v865, 72
        %v1683 = vpop.permute.xlu0 %1682
        %v1685 = vsel %vm870, %v1681, 0
        %v1688 = vsel %vm870, %v1683, 0
        %1690 = vmatprep.subr.bf16.mxu0 0
        %1691 = vmatpush1.bf16.xpose.msra.mxu0 %v1688
        %1692 = vmatprep.subr.bf16.mxu0 0
        %1693 = vmatpush1.bf16.xpose.msra.mxu0 0
        %1694 = vmatprep.subr.bf16.mxu0 0
        %1695 = vmatpush1.bf16.xpose.msra.mxu0 0
        %1696 = vmatprep.subr.bf16.mxu0 0
        %1697 = vmatpush1.bf16.xpose.msra.mxu0 0
        %1698 = vmatprep.subr.bf16.mxu0 0
        %1699 = vmatpush1.bf16.xpose.msra.mxu0 0
        %1700 = vmatprep.subr.bf16.mxu0 0
        %1701 = vmatpush1.bf16.xpose.msra.mxu0 0
        %1702 = vmatprep.subr.bf16.mxu0 0
        %1703 = vmatpush1.bf16.xpose.msra.mxu0 0
        %1704 = vmatprep.subr.bf16.mxu0 0
        %1705 = vmatpush1.bf16.xpose.msra.mxu0 0
        %1706 = vmatprep.subr.bf16.mxu0 0
        %1707 = vmatpush1.bf16.xpose.msra.mxu0 0
        %1708 = vmatprep.subr.bf16.mxu0 0
        %1709 = vmatpush1.bf16.xpose.msra.mxu0 0
        %1710 = vmatprep.subr.bf16.mxu0 0
        %1711 = vmatpush1.bf16.xpose.msra.mxu0 0
        %1712 = vmatprep.subr.bf16.mxu0 0
        %1713 = vmatpush1.bf16.xpose.msra.mxu0 0
        %1714 = vmatprep.subr.bf16.mxu0 0
        %1715 = vmatpush1.bf16.xpose.msra.mxu0 0
        %1716 = vmatprep.subr.bf16.mxu0 0
        %1717 = vmatpush1.bf16.xpose.msra.mxu0 0
        %1718 = vmatprep.subr.bf16.mxu0 0
        %1719 = vmatpush1.bf16.xpose.msra.mxu0 0
        %1720 = vmatprep.subr.bf16.mxu0 0
        %1721 = vmatpush1.bf16.xpose.msra.mxu0 0
        %1722 = vmatprep.mubr.bf16.mxu0 0
        %1723 = vmatmul.mubr.bf16.gmra.mrb[0].mxu0 %v1685
        %v1724 = vpop.f32.mrb[0].mxu0
        %v1725 = vadd.f32 %v862, %v1724
        %v1726 = vpop.f32.mrb[0].mxu0
        %v1727 = vpop.f32.mrb[0].mxu0
        %v1728 = vpop.f32.mrb[0].mxu0
        %1729 = vdwg.mxu0
        %1730 = vrot.lane.b32.xlu0 %v864, 104
        %v1731 = vpop.permute.xlu0 %1730
        %1732 = vrot.lane.b32.xlu0 %v866, 72
        %v1733 = vpop.permute.xlu0 %1732
        %v1735 = vsel %vm870, %v1731, 0
        %v1738 = vsel %vm870, %v1733, 0
        %1740 = vmatprep.subr.bf16.mxu0 0
        %1741 = vmatpush1.bf16.xpose.msra.mxu0 %v1738
        %1742 = vmatprep.subr.bf16.mxu0 0
        %1743 = vmatpush1.bf16.xpose.msra.mxu0 0
        %1744 = vmatprep.subr.bf16.mxu0 0
        %1745 = vmatpush1.bf16.xpose.msra.mxu0 0
        %1746 = vmatprep.subr.bf16.mxu0 0
        %1747 = vmatpush1.bf16.xpose.msra.mxu0 0
        %1748 = vmatprep.subr.bf16.mxu0 0
        %1749 = vmatpush1.bf16.xpose.msra.mxu0 0
        %1750 = vmatprep.subr.bf16.mxu0 0
        %1751 = vmatpush1.bf16.xpose.msra.mxu0 0
        %1752 = vmatprep.subr.bf16.mxu0 0
        %1753 = vmatpush1.bf16.xpose.msra.mxu0 0
        %1754 = vmatprep.subr.bf16.mxu0 0
        %1755 = vmatpush1.bf16.xpose.msra.mxu0 0
        %1756 = vmatprep.subr.bf16.mxu0 0
        %1757 = vmatpush1.bf16.xpose.msra.mxu0 0
        %1758 = vmatprep.subr.bf16.mxu0 0
        %1759 = vmatpush1.bf16.xpose.msra.mxu0 0
        %1760 = vmatprep.subr.bf16.mxu0 0
        %1761 = vmatpush1.bf16.xpose.msra.mxu0 0
        %1762 = vmatprep.subr.bf16.mxu0 0
        %1763 = vmatpush1.bf16.xpose.msra.mxu0 0
        %1764 = vmatprep.subr.bf16.mxu0 0
        %1765 = vmatpush1.bf16.xpose.msra.mxu0 0
        %1766 = vmatprep.subr.bf16.mxu0 0
        %1767 = vmatpush1.bf16.xpose.msra.mxu0 0
        %1768 = vmatprep.subr.bf16.mxu0 0
        %1769 = vmatpush1.bf16.xpose.msra.mxu0 0
        %1770 = vmatprep.subr.bf16.mxu0 0
        %1771 = vmatpush1.bf16.xpose.msra.mxu0 0
        %1772 = vmatprep.mubr.bf16.mxu0 0
        %1773 = vmatmul.mubr.bf16.gmra.mrb[0].mxu0 %v1735
        %v1774 = vpop.f32.mrb[0].mxu0
        %v1775 = vadd.f32 %v862, %v1774
        %v1776 = vpop.f32.mrb[0].mxu0
        %v1777 = vpop.f32.mrb[0].mxu0
        %v1778 = vpop.f32.mrb[0].mxu0
        %1779 = vdwg.mxu0
        %v1780 = vsel %vm870, %v1725, -inf
        %1781 = vmax.xlane.f32.xlu0 %v1780
        %v1782 = vpop.xlane.xlu0 %1781
        %v1783 = vsel %vm870, %v1775, -inf
        %1784 = vmax.xlane.f32.xlu0 %v1783
        %v1785 = vpop.xlane.xlu0 %1784
        %v1786 = vsub.f32 %v1725, %v1782
        %v1787 = vsub.f32 %v1775, %v1785
        %v1788 = vmul.f32 %v1786, 1.442695
        %v1789 = vpow.pop %v1788
        %v1790 = vmul.f32 %v1787, 1.442695
        %v1791 = vpow.pop %v1790
        %v1792 = vsel %vm870, %v1789, 0.0
        %1793 = vadd.xlane.f32.xlu0 %v1792
        %v1794 = vpop.xlane.xlu0 %1793
        %v1795 = vsel %vm870, %v1791, 0.0
        %1796 = vadd.xlane.f32.xlu0 %v1795
        %v1797 = vpop.xlane.xlu0 %1796
        %v1798 = vrcp.pop %v1794
        %v1799 = vrcp.pop %v1797
        %v1800 = vmul.f32 %v1789, %v1798
        %v1801 = vmul.f32 %v1791, %v1799
        %v1802 = vpack.c.bf16 %v1800, %v1800
        %v1803 = vpack.c.bf16 %v1801, %v1801
        %1804 = vrot.lane.b32.xlu0 %v865, 40
        %v1805 = vpop.permute.xlu0 %1804
        %v1807 = vsel %vm870, %v1802, 0
        %v1810 = vsel %vm995, %v1805, 0
        %1812 = vmatprep.subr.bf16.mxu0 0
        %1813 = vmatpush1.bf16.msra.mxu0 %v1810
        %1814 = vmatprep.subr.bf16.mxu0 0
        %1815 = vmatpush1.bf16.msra.mxu0 0
        %1816 = vmatprep.subr.bf16.mxu0 0
        %1817 = vmatpush1.bf16.msra.mxu0 0
        %1818 = vmatprep.subr.bf16.mxu0 0
        %1819 = vmatpush1.bf16.msra.mxu0 0
        %1820 = vmatprep.subr.bf16.mxu0 0
        %1821 = vmatpush1.bf16.msra.mxu0 0
        %1822 = vmatprep.subr.bf16.mxu0 0
        %1823 = vmatpush1.bf16.msra.mxu0 0
        %1824 = vmatprep.subr.bf16.mxu0 0
        %1825 = vmatpush1.bf16.msra.mxu0 0
        %1826 = vmatprep.subr.bf16.mxu0 0
        %1827 = vmatpush1.bf16.msra.mxu0 0
        %1828 = vmatprep.subr.bf16.mxu0 0
        %1829 = vmatpush1.bf16.msra.mxu0 0
        %1830 = vmatprep.subr.bf16.mxu0 0
        %1831 = vmatpush1.bf16.msra.mxu0 0
        %1832 = vmatprep.subr.bf16.mxu0 0
        %1833 = vmatpush1.bf16.msra.mxu0 0
        %1834 = vmatprep.subr.bf16.mxu0 0
        %1835 = vmatpush1.bf16.msra.mxu0 0
        %1836 = vmatprep.subr.bf16.mxu0 0
        %1837 = vmatpush1.bf16.msra.mxu0 0
        %1838 = vmatprep.subr.bf16.mxu0 0
        %1839 = vmatpush1.bf16.msra.mxu0 0
        %1840 = vmatprep.subr.bf16.mxu0 0
        %1841 = vmatpush1.bf16.msra.mxu0 0
        %1842 = vmatprep.subr.bf16.mxu0 0
        %1843 = vmatpush1.bf16.msra.mxu0 0
        %1844 = vmatprep.mubr.bf16.mxu0 0
        %1845 = vmatmul.mubr.bf16.gmra.mrb[0].mxu0 %v1807
        %v1846 = vpop.f32.mrb[0].mxu0
        %v1847 = vadd.f32 0.0, %v1846
        %v1848 = vpop.f32.mrb[0].mxu0
        %v1849 = vpop.f32.mrb[0].mxu0
        %v1850 = vpop.f32.mrb[0].mxu0
        %1851 = vdwg.mxu0
        %1852 = vrot.lane.b32.xlu0 %v866, 40
        %v1853 = vpop.permute.xlu0 %1852
        %v1855 = vsel %vm870, %v1803, 0
        %v1858 = vsel %vm995, %v1853, 0
        %1860 = vmatprep.subr.bf16.mxu0 0
        %1861 = vmatpush1.bf16.msra.mxu0 %v1858
        %1862 = vmatprep.subr.bf16.mxu0 0
        %1863 = vmatpush1.bf16.msra.mxu0 0
        %1864 = vmatprep.subr.bf16.mxu0 0
        %1865 = vmatpush1.bf16.msra.mxu0 0
        %1866 = vmatprep.subr.bf16.mxu0 0
        %1867 = vmatpush1.bf16.msra.mxu0 0
        %1868 = vmatprep.subr.bf16.mxu0 0
        %1869 = vmatpush1.bf16.msra.mxu0 0
        %1870 = vmatprep.subr.bf16.mxu0 0
        %1871 = vmatpush1.bf16.msra.mxu0 0
        %1872 = vmatprep.subr.bf16.mxu0 0
        %1873 = vmatpush1.bf16.msra.mxu0 0
        %1874 = vmatprep.subr.bf16.mxu0 0
        %1875 = vmatpush1.bf16.msra.mxu0 0
        %1876 = vmatprep.subr.bf16.mxu0 0
        %1877 = vmatpush1.bf16.msra.mxu0 0
        %1878 = vmatprep.subr.bf16.mxu0 0
        %1879 = vmatpush1.bf16.msra.mxu0 0
        %1880 = vmatprep.subr.bf16.mxu0 0
        %1881 = vmatpush1.bf16.msra.mxu0 0
        %1882 = vmatprep.subr.bf16.mxu0 0
        %1883 = vmatpush1.bf16.msra.mxu0 0
        %1884 = vmatprep.subr.bf16.mxu0 0
        %1885 = vmatpush1.bf16.msra.mxu0 0
        %1886 = vmatprep.subr.bf16.mxu0 0
        %1887 = vmatpush1.bf16.msra.mxu0 0
        %1888 = vmatprep.subr.bf16.mxu0 0
        %1889 = vmatpush1.bf16.msra.mxu0 0
        %1890 = vmatprep.subr.bf16.mxu0 0
        %1891 = vmatpush1.bf16.msra.mxu0 0
        %1892 = vmatprep.mubr.bf16.mxu0 0
        %1893 = vmatmul.mubr.bf16.gmra.mrb[0].mxu0 %v1855
        %v1894 = vpop.f32.mrb[0].mxu0
        %v1895 = vadd.f32 0.0, %v1894
        %v1896 = vpop.f32.mrb[0].mxu0
        %v1897 = vpop.f32.mrb[0].mxu0
        %v1898 = vpop.f32.mrb[0].mxu0
        %1899 = vdwg.mxu0
        %v1900 = vpack.c.bf16 %v1895, %v1847
        %s1901 = scalar_lea.vmem %s708, 12
        %v1902 = vld [vmem:[%s1901] sm:$0xf]
        %v1904 = vsel %vm870, %v1900, 0
        %v1907 = vsel %vm995, %v1902, 0
        %1909 = vmatprep.subr.bf16.mxu0 0
        %1910 = vmatpush1.bf16.msra.mxu0 %v1907
        %1911 = vmatprep.subr.bf16.mxu0 0
        %1912 = vmatpush1.bf16.msra.mxu0 0
        %1913 = vmatprep.subr.bf16.mxu0 0
        %1914 = vmatpush1.bf16.msra.mxu0 0
        %1915 = vmatprep.subr.bf16.mxu0 0
        %1916 = vmatpush1.bf16.msra.mxu0 0
        %1917 = vmatprep.subr.bf16.mxu0 0
        %1918 = vmatpush1.bf16.msra.mxu0 0
        %1919 = vmatprep.subr.bf16.mxu0 0
        %1920 = vmatpush1.bf16.msra.mxu0 0
        %1921 = vmatprep.subr.bf16.mxu0 0
        %1922 = vmatpush1.bf16.msra.mxu0 0
        %1923 = vmatprep.subr.bf16.mxu0 0
        %1924 = vmatpush1.bf16.msra.mxu0 0
        %1925 = vmatprep.subr.bf16.mxu0 0
        %1926 = vmatpush1.bf16.msra.mxu0 0
        %1927 = vmatprep.subr.bf16.mxu0 0
        %1928 = vmatpush1.bf16.msra.mxu0 0
        %1929 = vmatprep.subr.bf16.mxu0 0
        %1930 = vmatpush1.bf16.msra.mxu0 0
        %1931 = vmatprep.subr.bf16.mxu0 0
        %1932 = vmatpush1.bf16.msra.mxu0 0
        %1933 = vmatprep.subr.bf16.mxu0 0
        %1934 = vmatpush1.bf16.msra.mxu0 0
        %1935 = vmatprep.subr.bf16.mxu0 0
        %1936 = vmatpush1.bf16.msra.mxu0 0
        %1937 = vmatprep.subr.bf16.mxu0 0
        %1938 = vmatpush1.bf16.msra.mxu0 0
        %1939 = vmatprep.subr.bf16.mxu0 0
        %1940 = vmatpush1.bf16.msra.mxu0 0
        %1941 = vmatprep.mubr.bf16.mxu0 0
        %1942 = vmatmul.mubr.bf16.gmra.mrb[0].mxu0 %v1904
        %v1943 = vpop.f32.mrb[0].mxu0
        %v1944 = vadd.f32 0.0, %v1943
        %v1945 = vpop.f32.mrb[0].mxu0
        %v1946 = vpop.f32.mrb[0].mxu0
        %v1947 = vadd.f32 0.0, %v1946
        %v1948 = vpop.f32.mrb[0].mxu0
        %1949 = vdwg.mxu0
        %v1950 = vadd.f32 %v1678, %v1944
        %v1951 = vadd.f32 %v1679, %v1947
        %v1952 = vadd.f32 %v744, %v1950
        %v1953 = vadd.f32 %v745, %v1951
        %v1954 = vld [vmem:[%s711] sm:$0x1]
        %v1956 = vlaneseq
        %v1957 = vshrl.u32 %v1956, 7
        %v1958 = vsub.s32 0, %v1957
        %v1959 = vrot.slane %v1954, %v1958
        %v1961 = vadd.f32 %v1952, %v1959
        %v1962 = vadd.f32 %v1953, %v1959
        %v1963 = vld [vmem:[%s714] sm:$0x1]
        %v1964 = vld [vmem:[%s717] sm:$0x1]
        %v1965 = vsel %vm748, %v1961, 0.0
        %1966 = vadd.xlane.f32.xlu0 %v1965
        %v1967 = vpop.xlane.xlu0 %1966
        %v1968 = vsel %vm748, %v1962, 0.0
        %1969 = vadd.xlane.f32.xlu0 %v1968
        %v1970 = vpop.xlane.xlu0 %1969
        %v1971 = vmul.f32 %v1967, %v755
        %v1972 = vmul.f32 %v1970, %v755
        %v1973 = vsub.f32 %v1961, %v1971
        %v1974 = vsub.f32 %v1962, %v1972
        %v1975 = vmul.f32 %v1973, %v1973
        %v1976 = vmul.f32 %v1974, %v1974
        %v1977 = vsel %vm748, %v1975, 0.0
        %1978 = vadd.xlane.f32.xlu0 %v1977
        %v1979 = vpop.xlane.xlu0 %1978
        %v1980 = vsel %vm748, %v1976, 0.0
        %1981 = vadd.xlane.f32.xlu0 %v1980
        %v1982 = vpop.xlane.xlu0 %1981
        %v1983 = vmul.f32 %v1979, %v755
        %v1984 = vmul.f32 %v1982, %v755
        %v1985 = vadd.f32 %v1983, 1e-05
        %v1986 = vadd.f32 %v1984, 1e-05
        %v1987 = vrsqrt.pop %v1985
        %v1988 = vrsqrt.pop %v1986
        %v1989 = vmul.f32 %v1973, %v1987
        %v1990 = vmul.f32 %v1974, %v1988
        %v1992 = vlaneseq
        %v1993 = vshrl.u32 %v1992, 7
        %v1994 = vsub.s32 0, %v1993
        %v1995 = vrot.slane %v1963, %v1994
        %v1997 = vmul.f32 %v1989, %v1995
        %v1998 = vmul.f32 %v1990, %v1995
        %v2000 = vlaneseq
        %v2001 = vshrl.u32 %v2000, 7
        %v2002 = vsub.s32 0, %v2001
        %v2003 = vrot.slane %v1964, %v2002
        %v2005 = vadd.f32 %v1997, %v2003
        %v2006 = vadd.f32 %v1998, %v2003
        %v2007 = vpack.c.bf16 %v2006, %v2005
        %v2008 = vld [vmem:[%s722] sm:$0xf]
        %v2009 = vld [vmem:[%s722 + $0x4] sm:$0xf]
        %v2010 = vld [vmem:[%s722 + $0x8] sm:$0xf]
        %v2011 = vld [vmem:[%s722 + $0xc] sm:$0xf]
        %v2012 = vld [vmem:[%s725] sm:$0x1]
        %v2014 = vlaneseq
        %v2015 = vshrl.u32 %v2014, 7
        %v2016 = vsub.s32 0, %v2015
        %v2017 = vrot.slane %v2012, %v2016
        %v2023 = vunpack.c.l.b16 %v2008
        %v2024 = vunpack.c.l.b16 %v2009
        %v2025 = vunpack.c.l.b16 %v2010
        %v2026 = vunpack.c.l.b16 %v2011
        %v2027 = vpack.c.b16 %v2024, %v2023
        %v2028 = vpack.c.b16 %v2026, %v2025
        %v2032 = vsel %vm748, %v2007, 0
        %2034 = vmatprep.subr.bf16.mxu0 0
        %2035 = vmatpush1.bf16.msra.mxu0 %v2027
        %2036 = vmatprep.subr.bf16.mxu0 0
        %2037 = vmatpush1.bf16.msra.mxu0 %v2028
        %2038 = vmatprep.subr.bf16.mxu0 0
        %2039 = vmatpush1.bf16.msra.mxu0 0
        %2040 = vmatprep.subr.bf16.mxu0 0
        %2041 = vmatpush1.bf16.msra.mxu0 0
        %2042 = vmatprep.subr.bf16.mxu0 0
        %2043 = vmatpush1.bf16.msra.mxu0 0
        %2044 = vmatprep.subr.bf16.mxu0 0
        %2045 = vmatpush1.bf16.msra.mxu0 0
        %2046 = vmatprep.subr.bf16.mxu0 0
        %2047 = vmatpush1.bf16.msra.mxu0 0
        %2048 = vmatprep.subr.bf16.mxu0 0
        %2049 = vmatpush1.bf16.msra.mxu0 0
        %2050 = vmatprep.subr.bf16.mxu0 0
        %2051 = vmatpush1.bf16.msra.mxu0 0
        %2052 = vmatprep.subr.bf16.mxu0 0
        %2053 = vmatpush1.bf16.msra.mxu0 0
        %2054 = vmatprep.subr.bf16.mxu0 0
        %2055 = vmatpush1.bf16.msra.mxu0 0
        %2056 = vmatprep.subr.bf16.mxu0 0
        %2057 = vmatpush1.bf16.msra.mxu0 0
        %2058 = vmatprep.subr.bf16.mxu0 0
        %2059 = vmatpush1.bf16.msra.mxu0 0
        %2060 = vmatprep.subr.bf16.mxu0 0
        %2061 = vmatpush1.bf16.msra.mxu0 0
        %2062 = vmatprep.subr.bf16.mxu0 0
        %2063 = vmatpush1.bf16.msra.mxu0 0
        %2064 = vmatprep.subr.bf16.mxu0 0
        %2065 = vmatpush1.bf16.msra.mxu0 0
        %2066 = vmatprep.mubr.bf16.mxu0 0
        %2067 = vmatmul.mubr.bf16.gmra.mrb[0].mxu0 %v2032
        %v2068 = vpop.f32.mrb[0].mxu0
        %v2069 = vadd.f32 %v2017, %v2068
        %v2070 = vpop.f32.mrb[0].mxu0
        %v2071 = vpop.f32.mrb[0].mxu0
        %v2072 = vadd.f32 %v2017, %v2071
        %v2073 = vpop.f32.mrb[0].mxu0
        %2074 = vdwg.mxu0
        %v2075 = vmul.f32 %v2069, 1.702
        %v2076 = vmul.f32 %v2072, 1.702
        %v2077 = vxor.u32 %v2075, 2147483648
        %v2078 = vxor.u32 %v2076, 2147483648
        %v2079 = vmul.f32 %v2077, 1.442695
        %v2080 = vpow.pop %v2079
        %v2081 = vmul.f32 %v2078, 1.442695
        %v2082 = vpow.pop %v2081
        %v2083 = vadd.f32 %v2080, 1.0
        %v2084 = vadd.f32 %v2082, 1.0
        %v2085 = vrcp.pop %v2083
        %v2086 = vmul.f32 1.0, %v2085
        %v2087 = vrcp.pop %v2084
        %v2088 = vmul.f32 1.0, %v2087
        %v2089 = vmul.f32 %v2069, %v2086
        %v2090 = vmul.f32 %v2072, %v2088
        %v2091 = vpack.c.bf16 %v2090, %v2089
        %v2092 = vld [vmem:[%s730] sm:$0xf]
        %v2093 = vld [vmem:[%s730 + $0x4] sm:$0xf]
        %v2094 = vld [vmem:[%s730 + $0x8] sm:$0xf]
        %v2095 = vld [vmem:[%s730 + $0xc] sm:$0xf]
        %v2096 = vld [vmem:[%s730 + $0x10] sm:$0xf]
        %v2097 = vld [vmem:[%s730 + $0x14] sm:$0xf]
        %v2098 = vld [vmem:[%s730 + $0x18] sm:$0xf]
        %v2099 = vld [vmem:[%s730 + $0x1c] sm:$0xf]
        %v2100 = vld [vmem:[%s730 + $0x20] sm:$0xf]
        %v2101 = vld [vmem:[%s730 + $0x24] sm:$0xf]
        %v2102 = vld [vmem:[%s730 + $0x28] sm:$0xf]
        %v2103 = vld [vmem:[%s730 + $0x2c] sm:$0xf]
        %v2104 = vld [vmem:[%s730 + $0x30] sm:$0xf]
        %v2105 = vld [vmem:[%s730 + $0x34] sm:$0xf]
        %v2106 = vld [vmem:[%s730 + $0x38] sm:$0xf]
        %v2107 = vld [vmem:[%s730 + $0x3c] sm:$0xf]
        %v2108 = vld [vmem:[%s733] sm:$0x1]
        %v2110 = vlaneseq
        %v2111 = vshrl.u32 %v2110, 7
        %v2112 = vsub.s32 0, %v2111
        %v2113 = vrot.slane %v2108, %v2112
        %v2131 = vunpack.c.l.b16 %v2092
        %v2132 = vunpack.c.l.b16 %v2093
        %v2133 = vunpack.c.l.b16 %v2094
        %v2134 = vunpack.c.l.b16 %v2095
        %v2135 = vunpack.c.l.b16 %v2096
        %v2136 = vunpack.c.l.b16 %v2097
        %v2137 = vunpack.c.l.b16 %v2098
        %v2138 = vunpack.c.l.b16 %v2099
        %v2139 = vunpack.c.l.b16 %v2100
        %v2140 = vunpack.c.l.b16 %v2101
        %v2141 = vunpack.c.l.b16 %v2102
        %v2142 = vunpack.c.l.b16 %v2103
        %v2143 = vunpack.c.l.b16 %v2104
        %v2144 = vunpack.c.l.b16 %v2105
        %v2145 = vunpack.c.l.b16 %v2106
        %v2146 = vunpack.c.l.b16 %v2107
        %v2147 = vpack.c.b16 %v2132, %v2131
        %v2148 = vpack.c.b16 %v2134, %v2133
        %v2149 = vpack.c.b16 %v2136, %v2135
        %v2150 = vpack.c.b16 %v2138, %v2137
        %v2151 = vpack.c.b16 %v2140, %v2139
        %v2152 = vpack.c.b16 %v2142, %v2141
        %v2153 = vpack.c.b16 %v2144, %v2143
        %v2154 = vpack.c.b16 %v2146, %v2145
        %2163 = vmatprep.subr.bf16.mxu0 0
        %2164 = vmatpush1.bf16.msra.mxu0 %v2147
        %2165 = vmatprep.subr.bf16.mxu0 0
        %2166 = vmatpush1.bf16.msra.mxu0 %v2148
        %2167 = vmatprep.subr.bf16.mxu0 0
        %2168 = vmatpush1.bf16.msra.mxu0 %v2149
        %2169 = vmatprep.subr.bf16.mxu0 0
        %2170 = vmatpush1.bf16.msra.mxu0 %v2150
        %2171 = vmatprep.subr.bf16.mxu0 0
        %2172 = vmatpush1.bf16.msra.mxu0 %v2151
        %2173 = vmatprep.subr.bf16.mxu0 0
        %2174 = vmatpush1.bf16.msra.mxu0 %v2152
        %2175 = vmatprep.subr.bf16.mxu0 0
        %2176 = vmatpush1.bf16.msra.mxu0 %v2153
        %2177 = vmatprep.subr.bf16.mxu0 0
        %2178 = vmatpush1.bf16.msra.mxu0 %v2154
        %2179 = vmatprep.subr.bf16.mxu0 0
        %2180 = vmatpush1.bf16.msra.mxu0 0
        %2181 = vmatprep.subr.bf16.mxu0 0
        %2182 = vmatpush1.bf16.msra.mxu0 0
        %2183 = vmatprep.subr.bf16.mxu0 0
        %2184 = vmatpush1.bf16.msra.mxu0 0
        %2185 = vmatprep.subr.bf16.mxu0 0
        %2186 = vmatpush1.bf16.msra.mxu0 0
        %2187 = vmatprep.subr.bf16.mxu0 0
        %2188 = vmatpush1.bf16.msra.mxu0 0
        %2189 = vmatprep.subr.bf16.mxu0 0
        %2190 = vmatpush1.bf16.msra.mxu0 0
        %2191 = vmatprep.subr.bf16.mxu0 0
        %2192 = vmatpush1.bf16.msra.mxu0 0
        %2193 = vmatprep.subr.bf16.mxu0 0
        %2194 = vmatpush1.bf16.msra.mxu0 0
        %2195 = vmatprep.mubr.bf16.mxu0 0
        %2196 = vmatmul.mubr.bf16.gmra.mrb[0].mxu0 %v2091
        %v2197 = vpop.f32.mrb[0].mxu0
        %v2198 = vadd.f32 %v2113, %v2197
        %v2199 = vpop.f32.mrb[0].mxu0
        %v2200 = vpop.f32.mrb[0].mxu0
        %v2201 = vadd.f32 %v2113, %v2200
        %v2202 = vpop.f32.mrb[0].mxu0
        %2203 = vdwg.mxu0
        %v2204 = vadd.f32 %v1961, %v2198
        %v2205 = vadd.f32 %v1962, %v2201
        %2206 = vst.msk [vmem:[#allocation2] sm:$0xff] %vm748, %v2204
        %2207 = vst.msk [vmem:[#allocation2 + $0x8] sm:$0xff] %vm748, %v2205
        %p2208 = scmp.eq.s32.totalorder %s30, 1
        // Predicated region
        $region97: #{tpu_custom_call.1} parent=91 // pred_check
          %p2209 = pneg %p2208
        $region98: #{tpu_custom_call.1} parent=91 // pred_check_branch
          %2211 = sbr.rel (%p2209) target = $region100
        $region99: #{tpu_custom_call.1} parent=91 // pred_region
          %v2212 = vld [vmem:[%s13] sm:$0x1]
          %v2213 = vld [vmem:[%s14] sm:$0x1]
          %v2214 = vsel %vm748, %v2204, 0.0
          %2215 = vadd.xlane.f32.xlu0 %v2214
          %v2216 = vpop.xlane.xlu0 %2215
          %v2217 = vsel %vm748, %v2205, 0.0
          %2218 = vadd.xlane.f32.xlu0 %v2217
          %v2219 = vpop.xlane.xlu0 %2218
          %v2220 = vmul.f32 %v2216, %v755
          %v2221 = vmul.f32 %v2219, %v755
          %v2222 = vsub.f32 %v2204, %v2220
          %v2223 = vsub.f32 %v2205, %v2221
          %v2224 = vmul.f32 %v2222, %v2222
          %v2225 = vmul.f32 %v2223, %v2223
          %v2226 = vsel %vm748, %v2224, 0.0
          %2227 = vadd.xlane.f32.xlu0 %v2226
          %v2228 = vpop.xlane.xlu0 %2227
          %v2229 = vsel %vm748, %v2225, 0.0
          %2230 = vadd.xlane.f32.xlu0 %v2229
          %v2231 = vpop.xlane.xlu0 %2230
          %v2232 = vmul.f32 %v2228, %v755
          %v2233 = vmul.f32 %v2231, %v755
          %v2234 = vadd.f32 %v2232, 1e-05
          %v2235 = vadd.f32 %v2233, 1e-05
          %v2236 = vrsqrt.pop %v2234
          %v2237 = vrsqrt.pop %v2235
          %v2238 = vmul.f32 %v2222, %v2236
          %v2239 = vmul.f32 %v2223, %v2237
          %v2241 = vlaneseq
          %v2242 = vshrl.u32 %v2241, 7
          %v2243 = vsub.s32 0, %v2242
          %v2244 = vrot.slane %v2212, %v2243
          %v2246 = vmul.f32 %v2238, %v2244
          %v2247 = vmul.f32 %v2239, %v2244
          %v2249 = vlaneseq
          %v2250 = vshrl.u32 %v2249, 7
          %v2251 = vsub.s32 0, %v2250
          %v2252 = vrot.slane %v2213, %v2251
          %v2254 = vadd.f32 %v2246, %v2252
          %v2255 = vadd.f32 %v2247, %v2252
          %v2256 = vsel %vm748, %v2254, 0.0
          %v2257 = vrot.slane %v2256, 4
          %v2258 = vadd.f32 %v2256, %v2257
          %v2259 = vrot.slane %v2258, 2
          %v2260 = vadd.f32 %v2258, %v2259
          %v2261 = vrot.slane %v2260, 1
          %v2262 = vadd.f32 %v2260, %v2261
          %v2263 = vsel %vm748, %v2255, 0.0
          %v2264 = vrot.slane %v2263, 4
          %v2265 = vadd.f32 %v2263, %v2264
          %v2266 = vrot.slane %v2265, 2
          %v2267 = vadd.f32 %v2265, %v2266
          %v2268 = vrot.slane %v2267, 1
          %v2269 = vadd.f32 %v2267, %v2268
          %v2270 = vrcp.pop 8.0
          %v2271 = vmul.f32 %v2262, %v2270
          %v2272 = vmul.f32 %v2269, %v2270
          %v2273 = vpack.c.bf16 %v2271, %v2271
          %v2274 = vpack.c.bf16 %v2272, %v2272
          %v2275 = vld [vmem:[%s15] sm:$0xf]
          %v2276 = vld [vmem:[%s15 + $0x4] sm:$0xf]
          %v2277 = vld [vmem:[%s15 + $0x8] sm:$0xf]
          %v2278 = vld [vmem:[%s15 + $0xc] sm:$0xf]
          %v2279 = vld [vmem:[%s16] sm:$0x1]
          %v2281 = vlaneseq
          %v2282 = vshrl.u32 %v2281, 7
          %v2283 = vsub.s32 0, %v2282
          %v2284 = vrot.slane %v2279, %v2283
          %v2288 = vunpack.c.l.b16 %v2273
          %v2289 = vunpack.c.l.b16 %v2274
          %vm2290 = vcmask 1041409
          %v2291 = vsel %vm2290, %v2289, %v2288
          %v2292 = vpack.c.b16 %v2291, %v2291
          %v2297 = vunpack.c.l.b16 %v2275
          %v2298 = vunpack.c.l.b16 %v2276
          %v2299 = vunpack.c.l.b16 %v2277
          %v2300 = vunpack.c.l.b16 %v2278
          %v2301 = vpack.c.b16 %v2298, %v2297
          %v2302 = vpack.c.b16 %v2300, %v2299
          %v2306 = vsel %vm748, %v2292, 0
          %2308 = vmatprep.subr.bf16.mxu0 0
          %2309 = vmatpush1.bf16.msra.mxu0 %v2301
          %2310 = vmatprep.subr.bf16.mxu0 0
          %2311 = vmatpush1.bf16.msra.mxu0 %v2302
          %2312 = vmatprep.subr.bf16.mxu0 0
          %2313 = vmatpush1.bf16.msra.mxu0 0
          %2314 = vmatprep.subr.bf16.mxu0 0
          %2315 = vmatpush1.bf16.msra.mxu0 0
          %2316 = vmatprep.subr.bf16.mxu0 0
          %2317 = vmatpush1.bf16.msra.mxu0 0
          %2318 = vmatprep.subr.bf16.mxu0 0
          %2319 = vmatpush1.bf16.msra.mxu0 0
          %2320 = vmatprep.subr.bf16.mxu0 0
          %2321 = vmatpush1.bf16.msra.mxu0 0
          %2322 = vmatprep.subr.bf16.mxu0 0
          %2323 = vmatpush1.bf16.msra.mxu0 0
          %2324 = vmatprep.subr.bf16.mxu0 0
          %2325 = vmatpush1.bf16.msra.mxu0 0
          %2326 = vmatprep.subr.bf16.mxu0 0
          %2327 = vmatpush1.bf16.msra.mxu0 0
          %2328 = vmatprep.subr.bf16.mxu0 0
          %2329 = vmatpush1.bf16.msra.mxu0 0
          %2330 = vmatprep.subr.bf16.mxu0 0
          %2331 = vmatpush1.bf16.msra.mxu0 0
          %2332 = vmatprep.subr.bf16.mxu0 0
          %2333 = vmatpush1.bf16.msra.mxu0 0
          %2334 = vmatprep.subr.bf16.mxu0 0
          %2335 = vmatpush1.bf16.msra.mxu0 0
          %2336 = vmatprep.subr.bf16.mxu0 0
          %2337 = vmatpush1.bf16.msra.mxu0 0
          %2338 = vmatprep.subr.bf16.mxu0 0
          %2339 = vmatpush1.bf16.msra.mxu0 0
          %2340 = vmatprep.mubr.bf16.mxu0 0
          %2341 = vmatmul.mubr.bf16.gmra.mrb[0].mxu0 %v2306
          %v2342 = vpop.f32.mrb[0].mxu0
          %v2343 = vadd.f32 %v2284, %v2342
          %v2344 = vpop.f32.mrb[0].mxu0
          %v2345 = vpop.f32.mrb[0].mxu0
          %v2346 = vpop.f32.mrb[0].mxu0
          %2347 = vdwg.mxu0
          %vm2348 = vcmask 123904
          %2349 = vst.msk [vmem:[#allocation3] sm:$0x3] %vm2348, %v2343
        $region100: #{tpu_custom_call.1} parent=91 // pred_fallthru
          _
        // Predicated region
        $region101: #{tpu_custom_call.1} parent=91 // pred_check
          %p2350 = pneg %p481
        $region102: #{tpu_custom_call.1} parent=91 // pred_check_branch
          %2352 = sbr.rel (%p2350) target = $region104
        $region103: #{tpu_custom_call.1} parent=91 // pred_region
          %s2354 = ssub.s32 32, 32
          %2355 = vsyncadd [#allocation4], %s2354
          %s2357 = sshll.u32 [#allocation3], 4
          %s2358 = int_to_ptr.vmem [resolvable:$true] %s2357
          %2360 = dma.vmem_to_hbm [thread:$0]  %s2358, 32, %s18, [#allocation4]
        $region104: #{tpu_custom_call.1} parent=91 // pred_fallthru
          _
        // Predicated region
        $region105: #{tpu_custom_call.1} parent=91 // pred_check
          %p2361 = pneg %p481
        $region106: #{tpu_custom_call.1} parent=91 // pred_check_branch
          %2363 = sbr.rel (%p2361) target = $region108
        $region107: #{tpu_custom_call.1} parent=91 // pred_region
          %2364 = dma.done [#allocation4], 32
        $region108: #{tpu_custom_call.1} parent=91 // pred_fallthru
          _
      $region92: #{tpu_custom_call.1} parent=5 // pred_fallthru
        _
      %p2365 = scmp.le.s32.totalorder 2, %s25
      // Predicated region
      $region109: #{tpu_custom_call.1} parent=5 // pred_check
        %p2366 = pneg %p2365
      $region110: #{tpu_custom_call.1} parent=5 // pred_check_branch
        %2368 = sbr.rel (%p2366) target = $region112
      $region111: #{tpu_custom_call.1} parent=5 // pred_region
        %s2369 = ssub.s32 %s25, 2
      $region112: #{tpu_custom_call.1} parent=5 // pred_fallthru
        _
    $region6: #{tpu_custom_call.1} parent=1 // loop_footer
      %s29 = sadd.s32 1, %s25
    $region7: #{tpu_custom_call.1} parent=1 // loop_footer_branch
      %24 = sbr.rel target = $region3
    $region8: #{tpu_custom_call.1} parent=1 // loop_exit
      _
    %2370 = vsyncpa [#allocation4], 1
    %s2371 = scalar_lea.sflag [#allocation4], 1
    %2372 = vsyncpa %s2371, 1

</llo_original>
